<compile_context>
chip_gen: v5e
topology: v5e:2x2
jax: 0.10.0
libtpu: 0.0.40
codegen_flags: <defaults>
</compile_context>

<pallas_src>
import functools
import math

import jax
import jax.numpy as jnp
from jax.experimental import pallas as pl
from jax.experimental.pallas import tpu as pltpu

ACT_DTYPE = jnp.bfloat16            # storage dtype for weights / activations
VMEM_LIMIT = 48 * 1024 * 1024       # safe on v5e/v6e (128 MiB) and v7x (64 MiB)


# ----------------------------- helpers -------------------------------------

def _gelu(x):
    # tanh-approximation of GELU (EUP-friendly), computed in f32.
    # TODO(synk): exact erf GELU would match torch.nn.GELU bit-for-bit.
    return 0.5 * x * (1.0 + jnp.tanh(0.7978845608028654 * (x + 0.044715 * x * x * x)))


def _pick_tile(dim, cap, align):
    """Largest tile <= cap that divides dim and is a multiple of align; else dim."""
    if dim <= cap:
        return dim
    t = (cap // align) * align
    while t >= align:
        if dim % t == 0:
            return t
        t -= align
    return dim


# ------------------------- tiled dense (+ gelu) -----------------------------

def _dense_kernel(x_ref, w_ref, b_ref, o_ref, acc_ref, *, activation):
    k = pl.program_id(2)

    @pl.when(k == 0)
    def _():
        acc_ref[...] = jnp.zeros_like(acc_ref)

    acc_ref[...] += jnp.dot(x_ref[...], w_ref[...],
                            preferred_element_type=jnp.float32)

    @pl.when(k == pl.num_programs(2) - 1)
    def _():
        y = acc_ref[...] + b_ref[...]
        if activation == "gelu":
            y = _gelu(y)
        o_ref[...] = y.astype(o_ref.dtype)


def dense(x, w, b, activation=None, *, tm=512, tn=512, tk=1024):
    """y = activation(x @ w + b); x:[M,K] bf16, w:[K,N] bf16, b:[N] f32."""
    M, K = x.shape
    N = w.shape[1]
    tm = _pick_tile(M, tm, 16)      # bf16 packs 16 rows / sublane group
    tn = _pick_tile(N, tn, 128)
    tk = _pick_tile(K, tk, 128)
    return pl.pallas_call(
        functools.partial(_dense_kernel, activation=activation),
        out_shape=jax.ShapeDtypeStruct((M, N), ACT_DTYPE),
        grid=(M // tm, N // tn, K // tk),
        in_specs=[
            pl.BlockSpec((tm, tk), lambda i, j, k: (i, k)),
            pl.BlockSpec((tk, tn), lambda i, j, k: (k, j)),
            pl.BlockSpec((1, tn), lambda i, j, k: (0, j)),
        ],
        out_specs=pl.BlockSpec((tm, tn), lambda i, j, k: (i, j)),
        scratch_shapes=[pltpu.VMEM((tm, tn), jnp.float32)],
        compiler_params=pltpu.CompilerParams(
            dimension_semantics=("parallel", "parallel", "arbitrary"),
            vmem_limit_bytes=VMEM_LIMIT),
    )(x, w, b.reshape(1, N))


# --------------- dense with fused residual-add + LayerNorm ------------------

def _dense_add_ln_kernel(x_ref, w_ref, b_ref, r_ref, g_ref, be_ref,
                         o_ref, acc_ref, *, eps):
    k = pl.program_id(1)

    @pl.when(k == 0)
    def _():
        acc_ref[...] = jnp.zeros_like(acc_ref)

    acc_ref[...] += jnp.dot(x_ref[...], w_ref[...],
                            preferred_element_type=jnp.float32)

    @pl.when(k == pl.num_programs(1) - 1)
    def _():
        y = acc_ref[...] + b_ref[...] + r_ref[...].astype(jnp.float32)
        mu = jnp.mean(y, axis=-1, keepdims=True)
        var = jnp.mean((y - mu) ** 2, axis=-1, keepdims=True)
        yn = (y - mu) * jax.lax.rsqrt(var + eps)
        o_ref[...] = (yn * g_ref[...] + be_ref[...]).astype(o_ref.dtype)


def dense_add_layernorm(x, w, b, resid, gamma, beta, eps=1e-5, *, tm=512, tk=1024):
    """LayerNorm(resid + x @ w + b); N (=hidden) kept un-tiled so the LN
    epilogue sees full rows (lane-dense output)."""
    M, K = x.shape
    N = w.shape[1]
    tm = _pick_tile(M, tm, 16)
    tk = _pick_tile(K, tk, 128)
    return pl.pallas_call(
        functools.partial(_dense_add_ln_kernel, eps=eps),
        out_shape=jax.ShapeDtypeStruct((M, N), ACT_DTYPE),
        grid=(M // tm, K // tk),
        in_specs=[
            pl.BlockSpec((tm, tk), lambda i, k: (i, k)),
            pl.BlockSpec((tk, N), lambda i, k: (k, 0)),
            pl.BlockSpec((1, N), lambda i, k: (0, 0)),
            pl.BlockSpec((tm, N), lambda i, k: (i, 0)),
            pl.BlockSpec((1, N), lambda i, k: (0, 0)),
            pl.BlockSpec((1, N), lambda i, k: (0, 0)),
        ],
        out_specs=pl.BlockSpec((tm, N), lambda i, k: (i, 0)),
        scratch_shapes=[pltpu.VMEM((tm, N), jnp.float32)],
        compiler_params=pltpu.CompilerParams(
            dimension_semantics=("parallel", "arbitrary"),
            vmem_limit_bytes=VMEM_LIMIT),
    )(x, w, b.reshape(1, N), resid, gamma.reshape(1, N), beta.reshape(1, N))


# ---------------------- row-tiled LayerNorm (embeddings) --------------------

def _ln_kernel(x_ref, g_ref, b_ref, o_ref, *, eps):
    x = x_ref[...].astype(jnp.float32)
    mu = jnp.mean(x, axis=-1, keepdims=True)
    var = jnp.mean((x - mu) ** 2, axis=-1, keepdims=True)
    y = (x - mu) * jax.lax.rsqrt(var + eps)
    o_ref[...] = (y * g_ref[...] + b_ref[...]).astype(o_ref.dtype)


def layernorm(x, gamma, beta, eps=1e-5, *, tm=512):
    M, D = x.shape
    tm = _pick_tile(M, tm, 16)
    return pl.pallas_call(
        functools.partial(_ln_kernel, eps=eps),
        out_shape=jax.ShapeDtypeStruct((M, D), ACT_DTYPE),
        grid=(M // tm,),
        in_specs=[
            pl.BlockSpec((tm, D), lambda i: (i, 0)),
            pl.BlockSpec((1, D), lambda i: (0, 0)),
            pl.BlockSpec((1, D), lambda i: (0, 0)),
        ],
        out_specs=pl.BlockSpec((tm, D), lambda i: (i, 0)),
        compiler_params=pltpu.CompilerParams(
            dimension_semantics=("parallel",),
            vmem_limit_bytes=VMEM_LIMIT),
    )(x, gamma.reshape(1, D), beta.reshape(1, D))


# ---------------------------- attention core --------------------------------

def _attn_kernel(q_ref, k_ref, v_ref, m_ref, o_ref, *, scale, heads, head_dim):
    # Q/K/V stay bf16 all the way to the MXU; accumulation is f32 via
    # preferred_element_type.  Softmax scale folded into the (small) Q block.
    q = q_ref[0] * scale                      # [tq, G*Dh] bf16
    kk = k_ref[0]                             # [S,  G*Dh] bf16
    v = v_ref[0]                              # [S,  G*Dh] bf16
    mask = m_ref[0]                           # [1, S] additive, f32
    outs = []
    # Static per-head loop (G is small).  The Dh-wide slices are documented as
    # potentially sub-lane-aligned (Dh=64); acceptable vs. an extra relayout.
    for g in range(heads):                    # noqa: B007
        lo = g * head_dim
        qg = q[:, lo:lo + head_dim]
        kg = kk[:, lo:lo + head_dim]
        vg = v[:, lo:lo + head_dim]
        # q @ k^T via dot_general contracting on last dims (no explicit .T)
        s = jax.lax.dot_general(qg, kg, (((1,), (1,)), ((), ())),
                                preferred_element_type=jnp.float32)
        s = s + mask                          # softmax stays in f32
        mx = jnp.max(s, axis=-1, keepdims=True)
        e = jnp.exp(s - mx)
        p = e * pl.reciprocal(jnp.sum(e, axis=-1, keepdims=True), approx=True)
        outs.append(jnp.dot(p.astype(vg.dtype), vg,
                            preferred_element_type=jnp.float32))
    # lane-dense (multiple-of-128) output store
    o_ref[0] = jnp.concatenate(outs, axis=-1).astype(o_ref.dtype)


def mha(qkv, add_mask, *, num_heads, head_dim, scale, tq=256):
    """qkv: [B, S, 3*H*Dh] (Q | K | V concatenated on features, heads laid out
    contiguously inside each section).  add_mask: [B, 1, S].  Returns [B,S,D].

    Grid = (B, S//tq, head_groups): the query-tile axis keeps both v7x
    TensorCores busy at small batch and bounds the f32 score tile to [tq, S].
    """
    B, S, _ = qkv.shape
    H, Dh = num_heads, head_dim
    D = H * Dh
    # heads per grid step: smallest group with a lane-dense (mult. of 128) block
    G = H
    for g in range(1, H + 1):
        if H % g == 0 and (g * Dh) % 128 == 0:
            G = g
            break
    HB = H // G
    blk = G * Dh
    tq = _pick_tile(S, tq, 16)

    def q_spec(off):
        return pl.BlockSpec((1, tq, blk), lambda b, qi, h, off=off: (b, qi, off + h))

    def kv_spec(off):
        return pl.BlockSpec((1, S, blk), lambda b, qi, h, off=off: (b, 0, off + h))

    # TODO(synk): for S >= ~4k, add KV tiling with an online-softmax
    # (flash-style) accumulator; [tq, S] score tiles are fine up to a few k.
    return pl.pallas_call(
        functools.partial(_attn_kernel, scale=scale, heads=G, head_dim=Dh),
        out_shape=jax.ShapeDtypeStruct((B, S, D), ACT_DTYPE),
        grid=(B, S // tq, HB),
        in_specs=[
            q_spec(0),            # Q head-group block, query-tiled
            kv_spec(HB),          # K head-group block, full S
            kv_spec(2 * HB),      # V head-group block, full S
            pl.BlockSpec((1, 1, S), lambda b, qi, h: (b, 0, 0)),
        ],
        out_specs=pl.BlockSpec((1, tq, blk), lambda b, qi, h: (b, qi, h)),
        compiler_params=pltpu.CompilerParams(
            dimension_semantics=("parallel", "parallel", "parallel"),
            vmem_limit_bytes=VMEM_LIMIT),
    )(qkv, qkv, qkv, add_mask)


# ------------------------------ parameters ----------------------------------

def trunc_normal(key, shape, std=0.02):
    # matches default_initializer: truncated_normal(std=0.02, a=-2*std, b=2*std)
    return std * jax.random.truncated_normal(key, -2.0, 2.0, shape, dtype=jnp.float32)


def init_params(key, vocab, max_pos, n_seg, D, F, L):
    keys = jax.random.split(key, 4 + L)
    wdt = ACT_DTYPE
    p = {}
    # embedding_pad_token_id = 0 -> zero row 0 (as nn.Embedding padding_idx does)
    p["word_emb"] = trunc_normal(keys[0], (vocab, D)).at[0].set(0.0).astype(wdt)
    p["pos_emb"] = trunc_normal(keys[1], (max_pos, D)).astype(wdt)   # learned
    p["seg_emb"] = trunc_normal(keys[2], (n_seg, D)).astype(wdt)
    p["ln_emb_g"] = jnp.ones((D,), jnp.float32)
    p["ln_emb_b"] = jnp.zeros((D,), jnp.float32)
    layers = []
    for l in range(L):
        lk = jax.random.split(keys[3 + l], 6)
        wq = trunc_normal(lk[0], (D, D))
        wk = trunc_normal(lk[1], (D, D))
        wv = trunc_normal(lk[2], (D, D))
        layers.append(dict(
            wqkv=jnp.concatenate([wq, wk, wv], axis=1).astype(wdt),
            bqkv=jnp.zeros((3 * D,), jnp.float32),
            wo=trunc_normal(lk[3], (D, D)).astype(wdt),
            bo=jnp.zeros((D,), jnp.float32),
            ln1_g=jnp.ones((D,), jnp.float32), ln1_b=jnp.zeros((D,), jnp.float32),
            w1=trunc_normal(lk[4], (D, F)).astype(wdt),
            b1=jnp.zeros((F,), jnp.float32),
            w2=trunc_normal(lk[5], (F, D)).astype(wdt),
            b2=jnp.zeros((D,), jnp.float32),
            ln2_g=jnp.ones((D,), jnp.float32), ln2_b=jnp.zeros((D,), jnp.float32),
        ))
    p["layers"] = layers
    p["pool_w"] = trunc_normal(keys[3 + L], (D, D)).astype(wdt)
    p["pool_b"] = jnp.zeros((D,), jnp.float32)
    return p


# -------------------------------- forward -----------------------------------

def bert_forward(params, input_ids, segment_ids, attention_mask, *,
                 num_heads, ln_eps=1e-5):
    B, S = input_ids.shape
    D = params["word_emb"].shape[1]
    H = num_heads
    Dh = D // H

    # EmbeddingLayer: word + learned position + segment embeddings.
    # TODO(synk): embedding gathers stay in XLA (no clean Pallas equivalent
    # without a manual DMA gather).
    pos_ids = jnp.arange(S)
    emb = (params["word_emb"][input_ids].astype(jnp.float32)
           + params["pos_emb"][pos_ids][None, :, :].astype(jnp.float32)
           + params["seg_emb"][segment_ids].astype(jnp.float32))
    x = emb.reshape(B * S, D)

    # embed_ln_f; dropout_embd is identity at inference.
    h = layernorm(x, params["ln_emb_g"], params["ln_emb_b"], ln_eps)

    # 2D attention_mask [B, S] -> additive key-padding mask [B, 1, S] (f32).
    add_mask = ((1.0 - attention_mask.astype(jnp.float32)) * -1e4)[:, None, :]
    scale = 1.0 / math.sqrt(Dh)      # attention_type='scaled_dot_product'

    # Post-LN TransformerEncoder stack (dropouts are identity at inference).
    for layer in params["layers"]:
        qkv = dense(h, layer["wqkv"], layer["bqkv"])               # [B*S, 3D]
        ctx = mha(qkv.reshape(B, S, 3 * D), add_mask,
                  num_heads=H, head_dim=Dh, scale=scale)           # [B, S, D]
        # attention out-projection with fused residual-add + LayerNorm
        h = dense_add_layernorm(ctx.reshape(B * S, D), layer["wo"], layer["bo"],
                                h, layer["ln1_g"], layer["ln1_b"], ln_eps)
        # FFN: gelu up-projection, then down-projection fused with add + LN
        ff = dense(h, layer["w1"], layer["b1"], activation="gelu")
        h = dense_add_layernorm(ff, layer["w2"], layer["b2"],
                                h, layer["ln2_g"], layer["ln2_b"], ln_eps)

    hidden_states = h.reshape(B, S, D)

    # BertPooler: [CLS] hidden state -> dense + gelu (this spec's nonlinearity
    # is 'gelu' for the pooler too).  Tiny [B, D] matmul, left to XLA.
    cls = hidden_states[:, 0].astype(jnp.float32)
    pooled = _gelu(jnp.dot(cls, params["pool_w"].astype(jnp.float32),
                           preferred_element_type=jnp.float32) + params["pool_b"])
    return hidden_states, pooled.astype(ACT_DTYPE)


# ---------------------------------- main ------------------------------------

if __name__ == "__main__":
    # Small synthetic config (vocab/pos/layers shrunk, semantics preserved).
    VOCAB, MAX_POS, N_SEG = 512, 64, 2
    D, H, F, L = 128, 4, 256, 2     # hidden, heads, filter_size, layers
    B, S = 2, 8

    key = jax.random.PRNGKey(0)
    pkey, ikey, skey = jax.random.split(key, 3)
    params = init_params(pkey, VOCAB, MAX_POS, N_SEG, D, F, L)

    input_ids = jax.random.randint(ikey, (B, S), 1, VOCAB, dtype=jnp.int32)
    segment_ids = jax.random.randint(skey, (B, S), 0, N_SEG, dtype=jnp.int32)
    attention_mask = jnp.ones((B, S), dtype=jnp.int32)   # 2D -> key padding mask

    fwd = jax.jit(functools.partial(bert_forward, num_heads=H))
    hidden, pooled = fwd(params, input_ids, segment_ids, attention_mask)
    jax.block_until_ready((hidden, pooled))

    assert hidden.shape == (B, S, D)
    assert pooled.shape == (B, D)
    assert jnp.all(jnp.isfinite(hidden.astype(jnp.float32)))
    assert jnp.all(jnp.isfinite(pooled.astype(jnp.float32)))
    print("KERNEL_OK")
</pallas_src>

<mosaic_0001>
module attributes {stable_mosaic.version = 11 : i64} {
  func.func @_ln_kernel(%arg0: i32, %arg1: memref<16x128xf32, #tpu.memory_space<vmem>>, %arg2: memref<1x128xf32, #tpu.memory_space<vmem>>, %arg3: memref<1x128xf32, #tpu.memory_space<vmem>>, %arg4: memref<16x128xbf16, #tpu.memory_space<vmem>>) attributes {dimension_semantics = [#tpu.dimension_semantics<parallel>], iteration_bounds = array<i64: 1>, scalar_prefetch = 0 : i64, scratch_operands = 0 : i64, tpu.core_type = #tpu.core_type<tc>, window_params = [{transform_indices = @transform_0, window_bounds = array<i64: 16, 128>}, {pipeline_mode = #tpu.pipeline_mode<synchronous>, transform_indices = @transform_1, window_bounds = array<i64: 1, 128>}, {pipeline_mode = #tpu.pipeline_mode<synchronous>, transform_indices = @transform_2, window_bounds = array<i64: 1, 128>}, {transform_indices = @transform_3, window_bounds = array<i64: 16, 128>}]} {
    %c0 = arith.constant 0 : index
    %c0_0 = arith.constant 0 : index
    %0 = vector.load %arg1[%c0, %c0_0] : memref<16x128xf32, #tpu.memory_space<vmem>>, vector<16x128xf32>
    %cst = arith.constant dense<0.000000e+00> : vector<16xf32>
    %1 = vector.multi_reduction <add>, %0, %cst [1] : vector<16x128xf32> to vector<16xf32>
    %2 = vector.shape_cast %1 : vector<16xf32> to vector<16x1xf32>
    %cst_1 = arith.constant 1.280000e+02 : f32
    %3 = vector.broadcast %cst_1 : f32 to vector<16x1xf32>
    %4 = arith.divf %2, %3 : vector<16x1xf32>
    %5 = vector.broadcast %4 : vector<16x1xf32> to vector<16x128xf32>
    %6 = arith.subf %0, %5 : vector<16x128xf32>
    %7 = arith.mulf %6, %6 : vector<16x128xf32>
    %cst_2 = arith.constant dense<0.000000e+00> : vector<16xf32>
    %8 = vector.multi_reduction <add>, %7, %cst_2 [1] : vector<16x128xf32> to vector<16xf32>
    %9 = vector.shape_cast %8 : vector<16xf32> to vector<16x1xf32>
    %cst_3 = arith.constant 1.280000e+02 : f32
    %10 = vector.broadcast %cst_3 : f32 to vector<16x1xf32>
    %11 = arith.divf %9, %10 : vector<16x1xf32>
    %12 = vector.broadcast %4 : vector<16x1xf32> to vector<16x128xf32>
    %13 = arith.subf %0, %12 : vector<16x128xf32>
    %cst_4 = arith.constant 9.99999974E-6 : f32
    %14 = vector.broadcast %cst_4 : f32 to vector<16x1xf32>
    %15 = arith.addf %11, %14 : vector<16x1xf32>
    %16 = math.rsqrt %15 : vector<16x1xf32>
    %17 = vector.broadcast %16 : vector<16x1xf32> to vector<16x128xf32>
    %18 = arith.mulf %13, %17 : vector<16x128xf32>
    %c0_5 = arith.constant 0 : index
    %c0_6 = arith.constant 0 : index
    %19 = vector.load %arg2[%c0_5, %c0_6] : memref<1x128xf32, #tpu.memory_space<vmem>>, vector<1x128xf32>
    %20 = vector.broadcast %19 : vector<1x128xf32> to vector<16x128xf32>
    %21 = arith.mulf %18, %20 : vector<16x128xf32>
    %c0_7 = arith.constant 0 : index
    %c0_8 = arith.constant 0 : index
    %22 = vector.load %arg3[%c0_7, %c0_8] : memref<1x128xf32, #tpu.memory_space<vmem>>, vector<1x128xf32>
    %23 = vector.broadcast %22 : vector<1x128xf32> to vector<16x128xf32>
    %24 = arith.addf %21, %23 : vector<16x128xf32>
    %25 = arith.truncf %24 : vector<16x128xf32> to vector<16x128xbf16>
    %c0_9 = arith.constant 0 : index
    %c0_10 = arith.constant 0 : index
    %26 = vector.load %arg4[%c0_9, %c0_10] : memref<16x128xbf16, #tpu.memory_space<vmem>>, vector<16x128xbf16>
    tpu.vector_store %arg4[%c0_9, %c0_10], %25 {strides = array<i32>} : memref<16x128xbf16, #tpu.memory_space<vmem>>, vector<16x128xbf16>,
    return
  }
  func.func @transform_0(%arg0: i32) -> (i32, i32) {
    %c0_i32 = arith.constant 0 : i32
    %c0_i32_0 = arith.constant 0 : i32
    return %arg0, %c0_i32 : i32, i32
  }
  func.func @transform_1(%arg0: i32) -> (i32, i32) {
    %c0_i32 = arith.constant 0 : i32
    %c0_i32_0 = arith.constant 0 : i32
    %c0_i32_1 = arith.constant 0 : i32
    return %c0_i32, %c0_i32_0 : i32, i32
  }
  func.func @transform_2(%arg0: i32) -> (i32, i32) {
    %c0_i32 = arith.constant 0 : i32
    %c0_i32_0 = arith.constant 0 : i32
    %c0_i32_1 = arith.constant 0 : i32
    return %c0_i32, %c0_i32_0 : i32, i32
  }
  func.func @transform_3(%arg0: i32) -> (i32, i32) {
    %c0_i32 = arith.constant 0 : i32
    %c0_i32_0 = arith.constant 0 : i32
    return %arg0, %c0_i32 : i32, i32
  }
}

module attributes {stable_mosaic.version = 11 : i64} {
  func.func @_dense_kernel(%arg0: i32, %arg1: i32, %arg2: i32, %arg3: memref<16x128xbf16, #tpu.memory_space<vmem>>, %arg4: memref<128x384xbf16, #tpu.memory_space<vmem>>, %arg5: memref<1x384xf32, #tpu.memory_space<vmem>>, %arg6: memref<16x384xbf16, #tpu.memory_space<vmem>>, %arg7: memref<16x384xf32, #tpu.memory_space<vmem>>) attributes {dimension_semantics = [#tpu.dimension_semantics<parallel>, #tpu.dimension_semantics<parallel>, #tpu.dimension_semantics<arbitrary>], iteration_bounds = array<i64: 1, 1, 1>, scalar_prefetch = 0 : i64, scratch_operands = 1 : i64, tpu.core_type = #tpu.core_type<tc>, window_params = [{transform_indices = @transform_0, window_bounds = array<i64: 16, 128>}, {transform_indices = @transform_1, window_bounds = array<i64: 128, 384>}, {transform_indices = @transform_2, window_bounds = array<i64: 1, 384>}, {transform_indices = @transform_3, window_bounds = array<i64: 16, 384>}]} {
    %c0_i32 = arith.constant 0 : i32
    %0 = arith.cmpi eq, %arg2, %c0_i32 : i32
    %1 = arith.extui %0 : i1 to i32
    %c0_i32_0 = arith.constant 0 : i32
    %2 = arith.cmpi ne, %1, %c0_i32_0 : i32
    scf.if %2 {
      %cst_10 = arith.constant 0.000000e+00 : f32
      %12 = vector.broadcast %cst_10 : f32 to vector<16x384xf32>
      %c0_11 = arith.constant 0 : index
      %c0_12 = arith.constant 0 : index
      %13 = vector.load %arg7[%c0_11, %c0_12] : memref<16x384xf32, #tpu.memory_space<vmem>>, vector<16x384xf32>
      tpu.vector_store %arg7[%c0_11, %c0_12], %12 {strides = array<i32>} : memref<16x384xf32, #tpu.memory_space<vmem>>, vector<16x384xf32>,
    } else {
    }
    %c0 = arith.constant 0 : index
    %c0_1 = arith.constant 0 : index
    %3 = vector.load %arg7[%c0, %c0_1] : memref<16x384xf32, #tpu.memory_space<vmem>>, vector<16x384xf32>
    %c0_2 = arith.constant 0 : index
    %c0_3 = arith.constant 0 : index
    %4 = vector.load %arg3[%c0_2, %c0_3] : memref<16x128xbf16, #tpu.memory_space<vmem>>, vector<16x128xbf16>
    %c0_4 = arith.constant 0 : index
    %c0_5 = arith.constant 0 : index
    %5 = vector.load %arg4[%c0_4, %c0_5] : memref<128x384xbf16, #tpu.memory_space<vmem>>, vector<128x384xbf16>
    %cst = arith.constant dense<0.000000e+00> : vector<16x384xf32>
    %6 = tpu.matmul %4, %5, %cst {dimension_numbers = #tpu.dot_dimension_numbers<[1], [0], [0], [1], [0, 0, 1, 1], [], []>} : vector<16x128xbf16>, vector<128x384xbf16>, vector<16x384xf32> -> vector<16x384xf32>
    %7 = arith.addf %3, %6 : vector<16x384xf32>
    %c0_6 = arith.constant 0 : index
    %c0_7 = arith.constant 0 : index
    %8 = vector.load %arg7[%c0_6, %c0_7] : memref<16x384xf32, #tpu.memory_space<vmem>>, vector<16x384xf32>
    tpu.vector_store %arg7[%c0_6, %c0_7], %7 {strides = array<i32>} : memref<16x384xf32, #tpu.memory_space<vmem>>, vector<16x384xf32>,
    %c0_i32_8 = arith.constant 0 : i32
    %9 = arith.cmpi eq, %arg2, %c0_i32_8 : i32
    %10 = arith.extui %9 : i1 to i32
    %c0_i32_9 = arith.constant 0 : i32
    %11 = arith.cmpi ne, %10, %c0_i32_9 : i32
    scf.if %11 {
      %c0_10 = arith.constant 0 : index
      %c0_11 = arith.constant 0 : index
      %12 = vector.load %arg7[%c0_10, %c0_11] : memref<16x384xf32, #tpu.memory_space<vmem>>, vector<16x384xf32>
      %c0_12 = arith.constant 0 : index
      %c0_13 = arith.constant 0 : index
      %13 = vector.load %arg5[%c0_12, %c0_13] : memref<1x384xf32, #tpu.memory_space<vmem>>, vector<1x384xf32>
      %14 = vector.broadcast %13 : vector<1x384xf32> to vector<16x384xf32>
      %15 = arith.addf %12, %14 : vector<16x384xf32>
      %16 = arith.truncf %15 : vector<16x384xf32> to vector<16x384xbf16>
      %c0_14 = arith.constant 0 : index
      %c0_15 = arith.constant 0 : index
      %17 = vector.load %arg6[%c0_14, %c0_15] : memref<16x384xbf16, #tpu.memory_space<vmem>>, vector<16x384xbf16>
      tpu.vector_store %arg6[%c0_14, %c0_15], %16 {strides = array<i32>} : memref<16x384xbf16, #tpu.memory_space<vmem>>, vector<16x384xbf16>,
    } else {
    }
    return
  }
  func.func @transform_0(%arg0: i32, %arg1: i32, %arg2: i32) -> (i32, i32) {
    %c0_i32 = arith.constant 0 : i32
    return %arg0, %arg2 : i32, i32
  }
  func.func @transform_1(%arg0: i32, %arg1: i32, %arg2: i32) -> (i32, i32) {
    %c0_i32 = arith.constant 0 : i32
    return %arg2, %arg1 : i32, i32
  }
  func.func @transform_2(%arg0: i32, %arg1: i32, %arg2: i32) -> (i32, i32) {
    %c0_i32 = arith.constant 0 : i32
    %c0_i32_0 = arith.constant 0 : i32
    return %c0_i32, %arg1 : i32, i32
  }
  func.func @transform_3(%arg0: i32, %arg1: i32, %arg2: i32) -> (i32, i32) {
    %c0_i32 = arith.constant 0 : i32
    return %arg0, %arg1 : i32, i32
  }
}

module attributes {stable_mosaic.version = 11 : i64} {
  func.func @_dense_add_ln_kernel(%arg0: i32, %arg1: i32, %arg2: memref<16x128xbf16, #tpu.memory_space<vmem>>, %arg3: memref<128x128xbf16, #tpu.memory_space<vmem>>, %arg4: memref<1x128xf32, #tpu.memory_space<vmem>>, %arg5: memref<16x128xbf16, #tpu.memory_space<vmem>>, %arg6: memref<1x128xf32, #tpu.memory_space<vmem>>, %arg7: memref<1x128xf32, #tpu.memory_space<vmem>>, %arg8: memref<16x128xbf16, #tpu.memory_space<vmem>>, %arg9: memref<16x128xf32, #tpu.memory_space<vmem>>) attributes {dimension_semantics = [#tpu.dimension_semantics<parallel>, #tpu.dimension_semantics<arbitrary>], iteration_bounds = array<i64: 1, 1>, scalar_prefetch = 0 : i64, scratch_operands = 1 : i64, tpu.core_type = #tpu.core_type<tc>, window_params = [{transform_indices = @transform_0, window_bounds = array<i64: 16, 128>}, {transform_indices = @transform_1, window_bounds = array<i64: 128, 128>}, {pipeline_mode = #tpu.pipeline_mode<synchronous>, transform_indices = @transform_2, window_bounds = array<i64: 1, 128>}, {transform_indices = @transform_3, window_bounds = array<i64: 16, 128>}, {pipeline_mode = #tpu.pipeline_mode<synchronous>, transform_indices = @transform_4, window_bounds = array<i64: 1, 128>}, {pipeline_mode = #tpu.pipeline_mode<synchronous>, transform_indices = @transform_5, window_bounds = array<i64: 1, 128>}, {transform_indices = @transform_6, window_bounds = array<i64: 16, 128>}]} {
    %c0_i32 = arith.constant 0 : i32
    %0 = arith.cmpi eq, %arg1, %c0_i32 : i32
    %1 = arith.extui %0 : i1 to i32
    %c0_i32_0 = arith.constant 0 : i32
    %2 = arith.cmpi ne, %1, %c0_i32_0 : i32
    scf.if %2 {
      %cst_10 = arith.constant 0.000000e+00 : f32
      %12 = vector.broadcast %cst_10 : f32 to vector<16x128xf32>
      %c0_11 = arith.constant 0 : index
      %c0_12 = arith.constant 0 : index
      %13 = vector.load %arg9[%c0_11, %c0_12] : memref<16x128xf32, #tpu.memory_space<vmem>>, vector<16x128xf32>
      tpu.vector_store %arg9[%c0_11, %c0_12], %12 {strides = array<i32>} : memref<16x128xf32, #tpu.memory_space<vmem>>, vector<16x128xf32>,
    } else {
    }
    %c0 = arith.constant 0 : index
    %c0_1 = arith.constant 0 : index
    %3 = vector.load %arg9[%c0, %c0_1] : memref<16x128xf32, #tpu.memory_space<vmem>>, vector<16x128xf32>
    %c0_2 = arith.constant 0 : index
    %c0_3 = arith.constant 0 : index
    %4 = vector.load %arg2[%c0_2, %c0_3] : memref<16x128xbf16, #tpu.memory_space<vmem>>, vector<16x128xbf16>
    %c0_4 = arith.constant 0 : index
    %c0_5 = arith.constant 0 : index
    %5 = vector.load %arg3[%c0_4, %c0_5] : memref<128x128xbf16, #tpu.memory_space<vmem>>, vector<128x128xbf16>
    %cst = arith.constant dense<0.000000e+00> : vector<16x128xf32>
    %6 = tpu.matmul %4, %5, %cst {dimension_numbers = #tpu.dot_dimension_numbers<[1], [0], [0], [1], [0, 0, 1, 1], [], []>} : vector<16x128xbf16>, vector<128x128xbf16>, vector<16x128xf32> -> vector<16x128xf32>
    %7 = arith.addf %3, %6 : vector<16x128xf32>
    %c0_6 = arith.constant 0 : index
    %c0_7 = arith.constant 0 : index
    %8 = vector.load %arg9[%c0_6, %c0_7] : memref<16x128xf32, #tpu.memory_space<vmem>>, vector<16x128xf32>
    tpu.vector_store %arg9[%c0_6, %c0_7], %7 {strides = array<i32>} : memref<16x128xf32, #tpu.memory_space<vmem>>, vector<16x128xf32>,
    %c0_i32_8 = arith.constant 0 : i32
    %9 = arith.cmpi eq, %arg1, %c0_i32_8 : i32
    %10 = arith.extui %9 : i1 to i32
    %c0_i32_9 = arith.constant 0 : i32
    %11 = arith.cmpi ne, %10, %c0_i32_9 : i32
    scf.if %11 {
      %c0_10 = arith.constant 0 : index
      %c0_11 = arith.constant 0 : index
      %12 = vector.load %arg9[%c0_10, %c0_11] : memref<16x128xf32, #tpu.memory_space<vmem>>, vector<16x128xf32>
      %c0_12 = arith.constant 0 : index
      %c0_13 = arith.constant 0 : index
      %13 = vector.load %arg4[%c0_12, %c0_13] : memref<1x128xf32, #tpu.memory_space<vmem>>, vector<1x128xf32>
      %14 = vector.broadcast %13 : vector<1x128xf32> to vector<16x128xf32>
      %15 = arith.addf %12, %14 : vector<16x128xf32>
      %c0_14 = arith.constant 0 : index
      %c0_15 = arith.constant 0 : index
      %16 = vector.load %arg5[%c0_14, %c0_15] : memref<16x128xbf16, #tpu.memory_space<vmem>>, vector<16x128xbf16>
      %17 = arith.extf %16 : vector<16x128xbf16> to vector<16x128xf32>
      %18 = arith.addf %15, %17 : vector<16x128xf32>
      %cst_16 = arith.constant dense<0.000000e+00> : vector<16xf32>
      %19 = vector.multi_reduction <add>, %18, %cst_16 [1] : vector<16x128xf32> to vector<16xf32>
      %20 = vector.shape_cast %19 : vector<16xf32> to vector<16x1xf32>
      %cst_17 = arith.constant 1.280000e+02 : f32
      %21 = vector.broadcast %cst_17 : f32 to vector<16x1xf32>
      %22 = arith.divf %20, %21 : vector<16x1xf32>
      %23 = vector.broadcast %22 : vector<16x1xf32> to vector<16x128xf32>
      %24 = arith.subf %18, %23 : vector<16x128xf32>
      %25 = arith.mulf %24, %24 : vector<16x128xf32>
      %cst_18 = arith.constant dense<0.000000e+00> : vector<16xf32>
      %26 = vector.multi_reduction <add>, %25, %cst_18 [1] : vector<16x128xf32> to vector<16xf32>
      %27 = vector.shape_cast %26 : vector<16xf32> to vector<16x1xf32>
      %cst_19 = arith.constant 1.280000e+02 : f32
      %28 = vector.broadcast %cst_19 : f32 to vector<16x1xf32>
      %29 = arith.divf %27, %28 : vector<16x1xf32>
      %30 = vector.broadcast %22 : vector<16x1xf32> to vector<16x128xf32>
      %31 = arith.subf %18, %30 : vector<16x128xf32>
      %cst_20 = arith.constant 9.99999974E-6 : f32
      %32 = vector.broadcast %cst_20 : f32 to vector<16x1xf32>
      %33 = arith.addf %29, %32 : vector<16x1xf32>
      %34 = math.rsqrt %33 : vector<16x1xf32>
      %35 = vector.broadcast %34 : vector<16x1xf32> to vector<16x128xf32>
      %36 = arith.mulf %31, %35 : vector<16x128xf32>
      %c0_21 = arith.constant 0 : index
      %c0_22 = arith.constant 0 : index
      %37 = vector.load %arg6[%c0_21, %c0_22] : memref<1x128xf32, #tpu.memory_space<vmem>>, vector<1x128xf32>
      %38 = vector.broadcast %37 : vector<1x128xf32> to vector<16x128xf32>
      %39 = arith.mulf %36, %38 : vector<16x128xf32>
      %c0_23 = arith.constant 0 : index
      %c0_24 = arith.constant 0 : index
      %40 = vector.load %arg7[%c0_23, %c0_24] : memref<1x128xf32, #tpu.memory_space<vmem>>, vector<1x128xf32>
      %41 = vector.broadcast %40 : vector<1x128xf32> to vector<16x128xf32>
      %42 = arith.addf %39, %41 : vector<16x128xf32>
      %43 = arith.truncf %42 : vector<16x128xf32> to vector<16x128xbf16>
      %c0_25 = arith.constant 0 : index
      %c0_26 = arith.constant 0 : index
      %44 = vector.load %arg8[%c0_25, %c0_26] : memref<16x128xbf16, #tpu.memory_space<vmem>>, vector<16x128xbf16>
      tpu.vector_store %arg8[%c0_25, %c0_26], %43 {strides = array<i32>} : memref<16x128xbf16, #tpu.memory_space<vmem>>, vector<16x128xbf16>,
    } else {
    }
    return
  }
  func.func @transform_0(%arg0: i32, %arg1: i32) -> (i32, i32) {
    %c0_i32 = arith.constant 0 : i32
    return %arg0, %arg1 : i32, i32
  }
  func.func @transform_1(%arg0: i32, %arg1: i32) -> (i32, i32) {
    %c0_i32 = arith.constant 0 : i32
    %c0_i32_0 = arith.constant 0 : i32
    return %arg1, %c0_i32 : i32, i32
  }
  func.func @transform_2(%arg0: i32, %arg1: i32) -> (i32, i32) {
    %c0_i32 = arith.constant 0 : i32
    %c0_i32_0 = arith.constant 0 : i32
    %c0_i32_1 = arith.constant 0 : i32
    return %c0_i32, %c0_i32_0 : i32, i32
  }
  func.func @transform_3(%arg0: i32, %arg1: i32) -> (i32, i32) {
    %c0_i32 = arith.constant 0 : i32
    %c0_i32_0 = arith.constant 0 : i32
    return %arg0, %c0_i32 : i32, i32
  }
  func.func @transform_4(%arg0: i32, %arg1: i32) -> (i32, i32) {
    %c0_i32 = arith.constant 0 : i32
    %c0_i32_0 = arith.constant 0 : i32
    %c0_i32_1 = arith.constant 0 : i32
    return %c0_i32, %c0_i32_0 : i32, i32
  }
  func.func @transform_5(%arg0: i32, %arg1: i32) -> (i32, i32) {
    %c0_i32 = arith.constant 0 : i32
    %c0_i32_0 = arith.constant 0 : i32
    %c0_i32_1 = arith.constant 0 : i32
    return %c0_i32, %c0_i32_0 : i32, i32
  }
  func.func @transform_6(%arg0: i32, %arg1: i32) -> (i32, i32) {
    %c0_i32 = arith.constant 0 : i32
    %c0_i32_0 = arith.constant 0 : i32
    return %arg0, %c0_i32 : i32, i32
  }
}

module attributes {stable_mosaic.version = 11 : i64} {
  func.func @_attn_kernel(%arg0: i32, %arg1: i32, %arg2: i32, %arg3: memref<1x8x128xbf16, #tpu.memory_space<vmem>>, %arg4: memref<1x8x128xbf16, #tpu.memory_space<vmem>>, %arg5: memref<1x8x128xbf16, #tpu.memory_space<vmem>>, %arg6: memref<1x1x8xf32, #tpu.memory_space<vmem>>, %arg7: memref<1x8x128xbf16, #tpu.memory_space<vmem>>) attributes {dimension_semantics = [#tpu.dimension_semantics<parallel>, #tpu.dimension_semantics<parallel>, #tpu.dimension_semantics<parallel>], iteration_bounds = array<i64: 2, 1, 1>, scalar_prefetch = 0 : i64, scratch_operands = 0 : i64, tpu.core_type = #tpu.core_type<tc>, window_params = [{transform_indices = @transform_0, window_bounds = array<i64: 1, 8, 128>}, {transform_indices = @transform_1, window_bounds = array<i64: 1, 8, 128>}, {transform_indices = @transform_2, window_bounds = array<i64: 1, 8, 128>}, {transform_indices = @transform_3, window_bounds = array<i64: 1, 1, 8>}, {transform_indices = @transform_4, window_bounds = array<i64: 1, 8, 128>}]} {
    %c0 = arith.constant 0 : index
    %c0_0 = arith.constant 0 : index
    %c0_1 = arith.constant 0 : index
    %0 = vector.load %arg3[%c0, %c0_0, %c0_1] : memref<1x8x128xbf16, #tpu.memory_space<vmem>>, vector<1x8x128xbf16>
    %1 = vector.shape_cast %0 : vector<1x8x128xbf16> to vector<8x128xbf16>
    %cst = arith.constant 1.767580e-01 : bf16
    %2 = vector.broadcast %cst : bf16 to vector<8x128xbf16>
    %3 = arith.mulf %1, %2 : vector<8x128xbf16>
    %c0_2 = arith.constant 0 : index
    %c0_3 = arith.constant 0 : index
    %c0_4 = arith.constant 0 : index
    %4 = vector.load %arg4[%c0_2, %c0_3, %c0_4] : memref<1x8x128xbf16, #tpu.memory_space<vmem>>, vector<1x8x128xbf16>
    %5 = vector.shape_cast %4 : vector<1x8x128xbf16> to vector<8x128xbf16>
    %c0_5 = arith.constant 0 : index
    %c0_6 = arith.constant 0 : index
    %c0_7 = arith.constant 0 : index
    %6 = vector.load %arg5[%c0_5, %c0_6, %c0_7] : memref<1x8x128xbf16, #tpu.memory_space<vmem>>, vector<1x8x128xbf16>
    %7 = vector.shape_cast %6 : vector<1x8x128xbf16> to vector<8x128xbf16>
    %c0_8 = arith.constant 0 : index
    %c0_9 = arith.constant 0 : index
    %c0_10 = arith.constant 0 : index
    %8 = vector.load %arg6[%c0_8, %c0_9, %c0_10] : memref<1x1x8xf32, #tpu.memory_space<vmem>>, vector<1x1x8xf32>
    %9 = vector.shape_cast %8 : vector<1x1x8xf32> to vector<1x8xf32>
    %10 = vector.extract_strided_slice %3 {offsets = [0, 0], sizes = [8, 32], strides = [1, 1]} : vector<8x128xbf16> to vector<8x32xbf16>
    %11 = vector.extract_strided_slice %5 {offsets = [0, 0], sizes = [8, 32], strides = [1, 1]} : vector<8x128xbf16> to vector<8x32xbf16>
    %12 = vector.extract_strided_slice %7 {offsets = [0, 0], sizes = [8, 32], strides = [1, 1]} : vector<8x128xbf16> to vector<8x32xbf16>
    %cst_11 = arith.constant dense<0.000000e+00> : vector<8x8xf32>
    %13 = tpu.matmul %10, %11, %cst_11 {dimension_numbers = #tpu.dot_dimension_numbers<[1], [1], [0], [0], [0, 0, 1, 0], [], []>} : vector<8x32xbf16>, vector<8x32xbf16>, vector<8x8xf32> -> vector<8x8xf32>
    %14 = vector.broadcast %9 : vector<1x8xf32> to vector<8x8xf32>
    %15 = arith.addf %13, %14 : vector<8x8xf32>
    %cst_12 = arith.constant dense<0xFF800000> : vector<8xf32>
    %16 = vector.multi_reduction <maximumf>, %15, %cst_12 [1] : vector<8x8xf32> to vector<8xf32>
    %17 = vector.shape_cast %16 : vector<8xf32> to vector<8x1xf32>
    %18 = vector.broadcast %17 : vector<8x1xf32> to vector<8x8xf32>
    %19 = arith.subf %15, %18 : vector<8x8xf32>
    %20 = math.exp %19 : vector<8x8xf32>
    %cst_13 = arith.constant dense<0.000000e+00> : vector<8xf32>
    %21 = vector.multi_reduction <add>, %20, %cst_13 [1] : vector<8x8xf32> to vector<8xf32>
    %22 = vector.shape_cast %21 : vector<8xf32> to vector<8x1xf32>
    %23 = tpu.reciprocal %22 {approx = true} : vector<8x1xf32> -> vector<8x1xf32>
    %24 = vector.broadcast %23 : vector<8x1xf32> to vector<8x8xf32>
    %25 = arith.mulf %20, %24 : vector<8x8xf32>
    %26 = arith.truncf %25 : vector<8x8xf32> to vector<8x8xbf16>
    %cst_14 = arith.constant dense<0.000000e+00> : vector<8x32xf32>
    %27 = tpu.matmul %26, %12, %cst_14 {dimension_numbers = #tpu.dot_dimension_numbers<[1], [0], [0], [1], [0, 0, 1, 1], [], []>} : vector<8x8xbf16>, vector<8x32xbf16>, vector<8x32xf32> -> vector<8x32xf32>
    %28 = vector.extract_strided_slice %3 {offsets = [0, 32], sizes = [8, 32], strides = [1, 1]} : vector<8x128xbf16> to vector<8x32xbf16>
    %29 = vector.extract_strided_slice %5 {offsets = [0, 32], sizes = [8, 32], strides = [1, 1]} : vector<8x128xbf16> to vector<8x32xbf16>
    %30 = vector.extract_strided_slice %7 {offsets = [0, 32], sizes = [8, 32], strides = [1, 1]} : vector<8x128xbf16> to vector<8x32xbf16>
    %cst_15 = arith.constant dense<0.000000e+00> : vector<8x8xf32>
    %31 = tpu.matmul %28, %29, %cst_15 {dimension_numbers = #tpu.dot_dimension_numbers<[1], [1], [0], [0], [0, 0, 1, 0], [], []>} : vector<8x32xbf16>, vector<8x32xbf16>, vector<8x8xf32> -> vector<8x8xf32>
    %32 = vector.broadcast %9 : vector<1x8xf32> to vector<8x8xf32>
    %33 = arith.addf %31, %32 : vector<8x8xf32>
    %cst_16 = arith.constant dense<0xFF800000> : vector<8xf32>
    %34 = vector.multi_reduction <maximumf>, %33, %cst_16 [1] : vector<8x8xf32> to vector<8xf32>
    %35 = vector.shape_cast %34 : vector<8xf32> to vector<8x1xf32>
    %36 = vector.broadcast %35 : vector<8x1xf32> to vector<8x8xf32>
    %37 = arith.subf %33, %36 : vector<8x8xf32>
    %38 = math.exp %37 : vector<8x8xf32>
    %cst_17 = arith.constant dense<0.000000e+00> : vector<8xf32>
    %39 = vector.multi_reduction <add>, %38, %cst_17 [1] : vector<8x8xf32> to vector<8xf32>
    %40 = vector.shape_cast %39 : vector<8xf32> to vector<8x1xf32>
    %41 = tpu.reciprocal %40 {approx = true} : vector<8x1xf32> -> vector<8x1xf32>
    %42 = vector.broadcast %41 : vector<8x1xf32> to vector<8x8xf32>
    %43 = arith.mulf %38, %42 : vector<8x8xf32>
    %44 = arith.truncf %43 : vector<8x8xf32> to vector<8x8xbf16>
    %cst_18 = arith.constant dense<0.000000e+00> : vector<8x32xf32>
    %45 = tpu.matmul %44, %30, %cst_18 {dimension_numbers = #tpu.dot_dimension_numbers<[1], [0], [0], [1], [0, 0, 1, 1], [], []>} : vector<8x8xbf16>, vector<8x32xbf16>, vector<8x32xf32> -> vector<8x32xf32>
    %46 = vector.extract_strided_slice %3 {offsets = [0, 64], sizes = [8, 32], strides = [1, 1]} : vector<8x128xbf16> to vector<8x32xbf16>
    %47 = vector.extract_strided_slice %5 {offsets = [0, 64], sizes = [8, 32], strides = [1, 1]} : vector<8x128xbf16> to vector<8x32xbf16>
    %48 = vector.extract_strided_slice %7 {offsets = [0, 64], sizes = [8, 32], strides = [1, 1]} : vector<8x128xbf16> to vector<8x32xbf16>
    %cst_19 = arith.constant dense<0.000000e+00> : vector<8x8xf32>
    %49 = tpu.matmul %46, %47, %cst_19 {dimension_numbers = #tpu.dot_dimension_numbers<[1], [1], [0], [0], [0, 0, 1, 0], [], []>} : vector<8x32xbf16>, vector<8x32xbf16>, vector<8x8xf32> -> vector<8x8xf32>
    %50 = vector.broadcast %9 : vector<1x8xf32> to vector<8x8xf32>
    %51 = arith.addf %49, %50 : vector<8x8xf32>
    %cst_20 = arith.constant dense<0xFF800000> : vector<8xf32>
    %52 = vector.multi_reduction <maximumf>, %51, %cst_20 [1] : vector<8x8xf32> to vector<8xf32>
    %53 = vector.shape_cast %52 : vector<8xf32> to vector<8x1xf32>
    %54 = vector.broadcast %53 : vector<8x1xf32> to vector<8x8xf32>
    %55 = arith.subf %51, %54 : vector<8x8xf32>
    %56 = math.exp %55 : vector<8x8xf32>
    %cst_21 = arith.constant dense<0.000000e+00> : vector<8xf32>
    %57 = vector.multi_reduction <add>, %56, %cst_21 [1] : vector<8x8xf32> to vector<8xf32>
    %58 = vector.shape_cast %57 : vector<8xf32> to vector<8x1xf32>
    %59 = tpu.reciprocal %58 {approx = true} : vector<8x1xf32> -> vector<8x1xf32>
    %60 = vector.broadcast %59 : vector<8x1xf32> to vector<8x8xf32>
    %61 = arith.mulf %56, %60 : vector<8x8xf32>
    %62 = arith.truncf %61 : vector<8x8xf32> to vector<8x8xbf16>
    %cst_22 = arith.constant dense<0.000000e+00> : vector<8x32xf32>
    %63 = tpu.matmul %62, %48, %cst_22 {dimension_numbers = #tpu.dot_dimension_numbers<[1], [0], [0], [1], [0, 0, 1, 1], [], []>} : vector<8x8xbf16>, vector<8x32xbf16>, vector<8x32xf32> -> vector<8x32xf32>
    %64 = vector.extract_strided_slice %3 {offsets = [0, 96], sizes = [8, 32], strides = [1, 1]} : vector<8x128xbf16> to vector<8x32xbf16>
    %65 = vector.extract_strided_slice %5 {offsets = [0, 96], sizes = [8, 32], strides = [1, 1]} : vector<8x128xbf16> to vector<8x32xbf16>
    %66 = vector.extract_strided_slice %7 {offsets = [0, 96], sizes = [8, 32], strides = [1, 1]} : vector<8x128xbf16> to vector<8x32xbf16>
    %cst_23 = arith.constant dense<0.000000e+00> : vector<8x8xf32>
    %67 = tpu.matmul %64, %65, %cst_23 {dimension_numbers = #tpu.dot_dimension_numbers<[1], [1], [0], [0], [0, 0, 1, 0], [], []>} : vector<8x32xbf16>, vector<8x32xbf16>, vector<8x8xf32> -> vector<8x8xf32>
    %68 = vector.broadcast %9 : vector<1x8xf32> to vector<8x8xf32>
    %69 = arith.addf %67, %68 : vector<8x8xf32>
    %cst_24 = arith.constant dense<0xFF800000> : vector<8xf32>
    %70 = vector.multi_reduction <maximumf>, %69, %cst_24 [1] : vector<8x8xf32> to vector<8xf32>
    %71 = vector.shape_cast %70 : vector<8xf32> to vector<8x1xf32>
    %72 = vector.broadcast %71 : vector<8x1xf32> to vector<8x8xf32>
    %73 = arith.subf %69, %72 : vector<8x8xf32>
    %74 = math.exp %73 : vector<8x8xf32>
    %cst_25 = arith.constant dense<0.000000e+00> : vector<8xf32>
    %75 = vector.multi_reduction <add>, %74, %cst_25 [1] : vector<8x8xf32> to vector<8xf32>
    %76 = vector.shape_cast %75 : vector<8xf32> to vector<8x1xf32>
    %77 = tpu.reciprocal %76 {approx = true} : vector<8x1xf32> -> vector<8x1xf32>
    %78 = vector.broadcast %77 : vector<8x1xf32> to vector<8x8xf32>
    %79 = arith.mulf %74, %78 : vector<8x8xf32>
    %80 = arith.truncf %79 : vector<8x8xf32> to vector<8x8xbf16>
    %cst_26 = arith.constant dense<0.000000e+00> : vector<8x32xf32>
    %81 = tpu.matmul %80, %66, %cst_26 {dimension_numbers = #tpu.dot_dimension_numbers<[1], [0], [0], [1], [0, 0, 1, 1], [], []>} : vector<8x8xbf16>, vector<8x32xbf16>, vector<8x32xf32> -> vector<8x32xf32>
    %82 = tpu.concatenate %27, %45, %63, %81 in 1 : vector<8x32xf32>, vector<8x32xf32>, vector<8x32xf32>, vector<8x32xf32> -> vector<8x128xf32>
    %83 = arith.truncf %82 : vector<8x128xf32> to vector<8x128xbf16>
    %c0_27 = arith.constant 0 : index
    %c0_28 = arith.constant 0 : index
    %c0_29 = arith.constant 0 : index
    %84 = vector.load %arg7[%c0_27, %c0_28, %c0_29] : memref<1x8x128xbf16, #tpu.memory_space<vmem>>, vector<1x8x128xbf16>
    %85 = vector.shape_cast %84 : vector<1x8x128xbf16> to vector<8x128xbf16>
    %86 = vector.shape_cast %83 : vector<8x128xbf16> to vector<1x8x128xbf16>
    tpu.vector_store %arg7[%c0_27, %c0_28, %c0_29], %86 {strides = array<i32>} : memref<1x8x128xbf16, #tpu.memory_space<vmem>>, vector<1x8x128xbf16>,
    return
  }
  func.func @transform_0(%arg0: i32, %arg1: i32, %arg2: i32) -> (i32, i32, i32) {
    %c0_i32 = arith.constant 0 : i32
    %0 = arith.addi %c0_i32, %arg2 : i32
    %c0_i32_0 = arith.constant 0 : i32
    return %arg0, %arg1, %0 : i32, i32, i32
  }
  func.func @transform_1(%arg0: i32, %arg1: i32, %arg2: i32) -> (i32, i32, i32) {
    %c1_i32 = arith.constant 1 : i32
    %0 = arith.addi %c1_i32, %arg2 : i32
    %c0_i32 = arith.constant 0 : i32
    %c0_i32_0 = arith.constant 0 : i32
    return %arg0, %c0_i32, %0 : i32, i32, i32
  }
  func.func @transform_2(%arg0: i32, %arg1: i32, %arg2: i32) -> (i32, i32, i32) {
    %c2_i32 = arith.constant 2 : i32
    %0 = arith.addi %c2_i32, %arg2 : i32
    %c0_i32 = arith.constant 0 : i32
    %c0_i32_0 = arith.constant 0 : i32
    return %arg0, %c0_i32, %0 : i32, i32, i32
  }
  func.func @transform_3(%arg0: i32, %arg1: i32, %arg2: i32) -> (i32, i32, i32) {
    %c0_i32 = arith.constant 0 : i32
    %c0_i32_0 = arith.constant 0 : i32
    %c0_i32_1 = arith.constant 0 : i32
    return %arg0, %c0_i32, %c0_i32_0 : i32, i32, i32
  }
  func.func @transform_4(%arg0: i32, %arg1: i32, %arg2: i32) -> (i32, i32, i32) {
    %c0_i32 = arith.constant 0 : i32
    return %arg0, %arg1, %arg2 : i32, i32, i32
  }
}

module attributes {stable_mosaic.version = 11 : i64} {
  func.func @_dense_kernel(%arg0: i32, %arg1: i32, %arg2: i32, %arg3: memref<16x128xbf16, #tpu.memory_space<vmem>>, %arg4: memref<128x256xbf16, #tpu.memory_space<vmem>>, %arg5: memref<1x256xf32, #tpu.memory_space<vmem>>, %arg6: memref<16x256xbf16, #tpu.memory_space<vmem>>, %arg7: memref<16x256xf32, #tpu.memory_space<vmem>>) attributes {dimension_semantics = [#tpu.dimension_semantics<parallel>, #tpu.dimension_semantics<parallel>, #tpu.dimension_semantics<arbitrary>], iteration_bounds = array<i64: 1, 1, 1>, scalar_prefetch = 0 : i64, scratch_operands = 1 : i64, tpu.core_type = #tpu.core_type<tc>, window_params = [{transform_indices = @transform_0, window_bounds = array<i64: 16, 128>}, {transform_indices = @transform_1, window_bounds = array<i64: 128, 256>}, {transform_indices = @transform_2, window_bounds = array<i64: 1, 256>}, {transform_indices = @transform_3, window_bounds = array<i64: 16, 256>}]} {
    %c0_i32 = arith.constant 0 : i32
    %0 = arith.cmpi eq, %arg2, %c0_i32 : i32
    %1 = arith.extui %0 : i1 to i32
    %c0_i32_0 = arith.constant 0 : i32
    %2 = arith.cmpi ne, %1, %c0_i32_0 : i32
    scf.if %2 {
      %cst_10 = arith.constant 0.000000e+00 : f32
      %12 = vector.broadcast %cst_10 : f32 to vector<16x256xf32>
      %c0_11 = arith.constant 0 : index
      %c0_12 = arith.constant 0 : index
      %13 = vector.load %arg7[%c0_11, %c0_12] : memref<16x256xf32, #tpu.memory_space<vmem>>, vector<16x256xf32>
      tpu.vector_store %arg7[%c0_11, %c0_12], %12 {strides = array<i32>} : memref<16x256xf32, #tpu.memory_space<vmem>>, vector<16x256xf32>,
    } else {
    }
    %c0 = arith.constant 0 : index
    %c0_1 = arith.constant 0 : index
    %3 = vector.load %arg7[%c0, %c0_1] : memref<16x256xf32, #tpu.memory_space<vmem>>, vector<16x256xf32>
    %c0_2 = arith.constant 0 : index
    %c0_3 = arith.constant 0 : index
    %4 = vector.load %arg3[%c0_2, %c0_3] : memref<16x128xbf16, #tpu.memory_space<vmem>>, vector<16x128xbf16>
    %c0_4 = arith.constant 0 : index
    %c0_5 = arith.constant 0 : index
    %5 = vector.load %arg4[%c0_4, %c0_5] : memref<128x256xbf16, #tpu.memory_space<vmem>>, vector<128x256xbf16>
    %cst = arith.constant dense<0.000000e+00> : vector<16x256xf32>
    %6 = tpu.matmul %4, %5, %cst {dimension_numbers = #tpu.dot_dimension_numbers<[1], [0], [0], [1], [0, 0, 1, 1], [], []>} : vector<16x128xbf16>, vector<128x256xbf16>, vector<16x256xf32> -> vector<16x256xf32>
    %7 = arith.addf %3, %6 : vector<16x256xf32>
    %c0_6 = arith.constant 0 : index
    %c0_7 = arith.constant 0 : index
    %8 = vector.load %arg7[%c0_6, %c0_7] : memref<16x256xf32, #tpu.memory_space<vmem>>, vector<16x256xf32>
    tpu.vector_store %arg7[%c0_6, %c0_7], %7 {strides = array<i32>} : memref<16x256xf32, #tpu.memory_space<vmem>>, vector<16x256xf32>,
    %c0_i32_8 = arith.constant 0 : i32
    %9 = arith.cmpi eq, %arg2, %c0_i32_8 : i32
    %10 = arith.extui %9 : i1 to i32
    %c0_i32_9 = arith.constant 0 : i32
    %11 = arith.cmpi ne, %10, %c0_i32_9 : i32
    scf.if %11 {
      %c0_10 = arith.constant 0 : index
      %c0_11 = arith.constant 0 : index
      %12 = vector.load %arg7[%c0_10, %c0_11] : memref<16x256xf32, #tpu.memory_space<vmem>>, vector<16x256xf32>
      %c0_12 = arith.constant 0 : index
      %c0_13 = arith.constant 0 : index
      %13 = vector.load %arg5[%c0_12, %c0_13] : memref<1x256xf32, #tpu.memory_space<vmem>>, vector<1x256xf32>
      %14 = vector.broadcast %13 : vector<1x256xf32> to vector<16x256xf32>
      %15 = arith.addf %12, %14 : vector<16x256xf32>
      %cst_14 = arith.constant 5.000000e-01 : f32
      %16 = vector.broadcast %cst_14 : f32 to vector<16x256xf32>
      %17 = arith.mulf %16, %15 : vector<16x256xf32>
      %cst_15 = arith.constant 4.471500e-02 : f32
      %18 = vector.broadcast %cst_15 : f32 to vector<16x256xf32>
      %19 = arith.mulf %18, %15 : vector<16x256xf32>
      %20 = arith.mulf %19, %15 : vector<16x256xf32>
      %21 = arith.mulf %20, %15 : vector<16x256xf32>
      %22 = arith.addf %15, %21 : vector<16x256xf32>
      %cst_16 = arith.constant 0.797884583 : f32
      %23 = vector.broadcast %cst_16 : f32 to vector<16x256xf32>
      %24 = arith.mulf %23, %22 : vector<16x256xf32>
      %25 = math.tanh %24 : vector<16x256xf32>
      %cst_17 = arith.constant 1.000000e+00 : f32
      %26 = vector.broadcast %cst_17 : f32 to vector<16x256xf32>
      %27 = arith.addf %26, %25 : vector<16x256xf32>
      %28 = arith.mulf %17, %27 : vector<16x256xf32>
      %29 = arith.truncf %28 : vector<16x256xf32> to vector<16x256xbf16>
      %c0_18 = arith.constant 0 : index
      %c0_19 = arith.constant 0 : index
      %30 = vector.load %arg6[%c0_18, %c0_19] : memref<16x256xbf16, #tpu.memory_space<vmem>>, vector<16x256xbf16>
      tpu.vector_store %arg6[%c0_18, %c0_19], %29 {strides = array<i32>} : memref<16x256xbf16, #tpu.memory_space<vmem>>, vector<16x256xbf16>,
    } else {
    }
    return
  }
  func.func @transform_0(%arg0: i32, %arg1: i32, %arg2: i32) -> (i32, i32) {
    %c0_i32 = arith.constant 0 : i32
    return %arg0, %arg2 : i32, i32
  }
  func.func @transform_1(%arg0: i32, %arg1: i32, %arg2: i32) -> (i32, i32) {
    %c0_i32 = arith.constant 0 : i32
    return %arg2, %arg1 : i32, i32
  }
  func.func @transform_2(%arg0: i32, %arg1: i32, %arg2: i32) -> (i32, i32) {
    %c0_i32 = arith.constant 0 : i32
    %c0_i32_0 = arith.constant 0 : i32
    return %c0_i32, %arg1 : i32, i32
  }
  func.func @transform_3(%arg0: i32, %arg1: i32, %arg2: i32) -> (i32, i32) {
    %c0_i32 = arith.constant 0 : i32
    return %arg0, %arg1 : i32, i32
  }
}

module attributes {stable_mosaic.version = 11 : i64} {
  func.func @_dense_add_ln_kernel(%arg0: i32, %arg1: i32, %arg2: memref<16x256xbf16, #tpu.memory_space<vmem>>, %arg3: memref<256x128xbf16, #tpu.memory_space<vmem>>, %arg4: memref<1x128xf32, #tpu.memory_space<vmem>>, %arg5: memref<16x128xbf16, #tpu.memory_space<vmem>>, %arg6: memref<1x128xf32, #tpu.memory_space<vmem>>, %arg7: memref<1x128xf32, #tpu.memory_space<vmem>>, %arg8: memref<16x128xbf16, #tpu.memory_space<vmem>>, %arg9: memref<16x128xf32, #tpu.memory_space<vmem>>) attributes {dimension_semantics = [#tpu.dimension_semantics<parallel>, #tpu.dimension_semantics<arbitrary>], iteration_bounds = array<i64: 1, 1>, scalar_prefetch = 0 : i64, scratch_operands = 1 : i64, tpu.core_type = #tpu.core_type<tc>, window_params = [{transform_indices = @transform_0, window_bounds = array<i64: 16, 256>}, {transform_indices = @transform_1, window_bounds = array<i64: 256, 128>}, {pipeline_mode = #tpu.pipeline_mode<synchronous>, transform_indices = @transform_2, window_bounds = array<i64: 1, 128>}, {transform_indices = @transform_3, window_bounds = array<i64: 16, 128>}, {pipeline_mode = #tpu.pipeline_mode<synchronous>, transform_indices = @transform_4, window_bounds = array<i64: 1, 128>}, {pipeline_mode = #tpu.pipeline_mode<synchronous>, transform_indices = @transform_5, window_bounds = array<i64: 1, 128>}, {transform_indices = @transform_6, window_bounds = array<i64: 16, 128>}]} {
    %c0_i32 = arith.constant 0 : i32
    %0 = arith.cmpi eq, %arg1, %c0_i32 : i32
    %1 = arith.extui %0 : i1 to i32
    %c0_i32_0 = arith.constant 0 : i32
    %2 = arith.cmpi ne, %1, %c0_i32_0 : i32
    scf.if %2 {
      %cst_10 = arith.constant 0.000000e+00 : f32
      %12 = vector.broadcast %cst_10 : f32 to vector<16x128xf32>
      %c0_11 = arith.constant 0 : index
      %c0_12 = arith.constant 0 : index
      %13 = vector.load %arg9[%c0_11, %c0_12] : memref<16x128xf32, #tpu.memory_space<vmem>>, vector<16x128xf32>
      tpu.vector_store %arg9[%c0_11, %c0_12], %12 {strides = array<i32>} : memref<16x128xf32, #tpu.memory_space<vmem>>, vector<16x128xf32>,
    } else {
    }
    %c0 = arith.constant 0 : index
    %c0_1 = arith.constant 0 : index
    %3 = vector.load %arg9[%c0, %c0_1] : memref<16x128xf32, #tpu.memory_space<vmem>>, vector<16x128xf32>
    %c0_2 = arith.constant 0 : index
    %c0_3 = arith.constant 0 : index
    %4 = vector.load %arg2[%c0_2, %c0_3] : memref<16x256xbf16, #tpu.memory_space<vmem>>, vector<16x256xbf16>
    %c0_4 = arith.constant 0 : index
    %c0_5 = arith.constant 0 : index
    %5 = vector.load %arg3[%c0_4, %c0_5] : memref<256x128xbf16, #tpu.memory_space<vmem>>, vector<256x128xbf16>
    %cst = arith.constant dense<0.000000e+00> : vector<16x128xf32>
    %6 = tpu.matmul %4, %5, %cst {dimension_numbers = #tpu.dot_dimension_numbers<[1], [0], [0], [1], [0, 0, 1, 1], [], []>} : vector<16x256xbf16>, vector<256x128xbf16>, vector<16x128xf32> -> vector<16x128xf32>
    %7 = arith.addf %3, %6 : vector<16x128xf32>
    %c0_6 = arith.constant 0 : index
    %c0_7 = arith.constant 0 : index
    %8 = vector.load %arg9[%c0_6, %c0_7] : memref<16x128xf32, #tpu.memory_space<vmem>>, vector<16x128xf32>
    tpu.vector_store %arg9[%c0_6, %c0_7], %7 {strides = array<i32>} : memref<16x128xf32, #tpu.memory_space<vmem>>, vector<16x128xf32>,
    %c0_i32_8 = arith.constant 0 : i32
    %9 = arith.cmpi eq, %arg1, %c0_i32_8 : i32
    %10 = arith.extui %9 : i1 to i32
    %c0_i32_9 = arith.constant 0 : i32
    %11 = arith.cmpi ne, %10, %c0_i32_9 : i32
    scf.if %11 {
      %c0_10 = arith.constant 0 : index
      %c0_11 = arith.constant 0 : index
      %12 = vector.load %arg9[%c0_10, %c0_11] : memref<16x128xf32, #tpu.memory_space<vmem>>, vector<16x128xf32>
      %c0_12 = arith.constant 0 : index
      %c0_13 = arith.constant 0 : index
      %13 = vector.load %arg4[%c0_12, %c0_13] : memref<1x128xf32, #tpu.memory_space<vmem>>, vector<1x128xf32>
      %14 = vector.broadcast %13 : vector<1x128xf32> to vector<16x128xf32>
      %15 = arith.addf %12, %14 : vector<16x128xf32>
      %c0_14 = arith.constant 0 : index
      %c0_15 = arith.constant 0 : index
      %16 = vector.load %arg5[%c0_14, %c0_15] : memref<16x128xbf16, #tpu.memory_space<vmem>>, vector<16x128xbf16>
      %17 = arith.extf %16 : vector<16x128xbf16> to vector<16x128xf32>
      %18 = arith.addf %15, %17 : vector<16x128xf32>
      %cst_16 = arith.constant dense<0.000000e+00> : vector<16xf32>
      %19 = vector.multi_reduction <add>, %18, %cst_16 [1] : vector<16x128xf32> to vector<16xf32>
      %20 = vector.shape_cast %19 : vector<16xf32> to vector<16x1xf32>
      %cst_17 = arith.constant 1.280000e+02 : f32
      %21 = vector.broadcast %cst_17 : f32 to vector<16x1xf32>
      %22 = arith.divf %20, %21 : vector<16x1xf32>
      %23 = vector.broadcast %22 : vector<16x1xf32> to vector<16x128xf32>
      %24 = arith.subf %18, %23 : vector<16x128xf32>
      %25 = arith.mulf %24, %24 : vector<16x128xf32>
      %cst_18 = arith.constant dense<0.000000e+00> : vector<16xf32>
      %26 = vector.multi_reduction <add>, %25, %cst_18 [1] : vector<16x128xf32> to vector<16xf32>
      %27 = vector.shape_cast %26 : vector<16xf32> to vector<16x1xf32>
      %cst_19 = arith.constant 1.280000e+02 : f32
      %28 = vector.broadcast %cst_19 : f32 to vector<16x1xf32>
      %29 = arith.divf %27, %28 : vector<16x1xf32>
      %30 = vector.broadcast %22 : vector<16x1xf32> to vector<16x128xf32>
      %31 = arith.subf %18, %30 : vector<16x128xf32>
      %cst_20 = arith.constant 9.99999974E-6 : f32
      %32 = vector.broadcast %cst_20 : f32 to vector<16x1xf32>
      %33 = arith.addf %29, %32 : vector<16x1xf32>
      %34 = math.rsqrt %33 : vector<16x1xf32>
      %35 = vector.broadcast %34 : vector<16x1xf32> to vector<16x128xf32>
      %36 = arith.mulf %31, %35 : vector<16x128xf32>
      %c0_21 = arith.constant 0 : index
      %c0_22 = arith.constant 0 : index
      %37 = vector.load %arg6[%c0_21, %c0_22] : memref<1x128xf32, #tpu.memory_space<vmem>>, vector<1x128xf32>
      %38 = vector.broadcast %37 : vector<1x128xf32> to vector<16x128xf32>
      %39 = arith.mulf %36, %38 : vector<16x128xf32>
      %c0_23 = arith.constant 0 : index
      %c0_24 = arith.constant 0 : index
      %40 = vector.load %arg7[%c0_23, %c0_24] : memref<1x128xf32, #tpu.memory_space<vmem>>, vector<1x128xf32>
      %41 = vector.broadcast %40 : vector<1x128xf32> to vector<16x128xf32>
      %42 = arith.addf %39, %41 : vector<16x128xf32>
      %43 = arith.truncf %42 : vector<16x128xf32> to vector<16x128xbf16>
      %c0_25 = arith.constant 0 : index
      %c0_26 = arith.constant 0 : index
      %44 = vector.load %arg8[%c0_25, %c0_26] : memref<16x128xbf16, #tpu.memory_space<vmem>>, vector<16x128xbf16>
      tpu.vector_store %arg8[%c0_25, %c0_26], %43 {strides = array<i32>} : memref<16x128xbf16, #tpu.memory_space<vmem>>, vector<16x128xbf16>,
    } else {
    }
    return
  }
  func.func @transform_0(%arg0: i32, %arg1: i32) -> (i32, i32) {
    %c0_i32 = arith.constant 0 : i32
    return %arg0, %arg1 : i32, i32
  }
  func.func @transform_1(%arg0: i32, %arg1: i32) -> (i32, i32) {
    %c0_i32 = arith.constant 0 : i32
    %c0_i32_0 = arith.constant 0 : i32
    return %arg1, %c0_i32 : i32, i32
  }
  func.func @transform_2(%arg0: i32, %arg1: i32) -> (i32, i32) {
    %c0_i32 = arith.constant 0 : i32
    %c0_i32_0 = arith.constant 0 : i32
    %c0_i32_1 = arith.constant 0 : i32
    return %c0_i32, %c0_i32_0 : i32, i32
  }
  func.func @transform_3(%arg0: i32, %arg1: i32) -> (i32, i32) {
    %c0_i32 = arith.constant 0 : i32
    %c0_i32_0 = arith.constant 0 : i32
    return %arg0, %c0_i32 : i32, i32
  }
  func.func @transform_4(%arg0: i32, %arg1: i32) -> (i32, i32) {
    %c0_i32 = arith.constant 0 : i32
    %c0_i32_0 = arith.constant 0 : i32
    %c0_i32_1 = arith.constant 0 : i32
    return %c0_i32, %c0_i32_0 : i32, i32
  }
  func.func @transform_5(%arg0: i32, %arg1: i32) -> (i32, i32) {
    %c0_i32 = arith.constant 0 : i32
    %c0_i32_0 = arith.constant 0 : i32
    %c0_i32_1 = arith.constant 0 : i32
    return %c0_i32, %c0_i32_0 : i32, i32
  }
  func.func @transform_6(%arg0: i32, %arg1: i32) -> (i32, i32) {
    %c0_i32 = arith.constant 0 : i32
    %c0_i32_0 = arith.constant 0 : i32
    return %arg0, %c0_i32 : i32, i32
  }
}

</mosaic_0001>

<llo_original>
// kernel: bert_forward.11
$region0: #{bert_forward.11}
  #allocation0 [shape = 'u32[]', space=smem, size = 0x4, offset = 0x4, fixed_abs, tag = 'smem constant byte address 0x4 - core index']
  #allocation1 [shape = 'u32[72,128]{1,0:T(1,128)}', space=vmem, size = 0x9000, scoped, tag = 'internal scratch']
  %s0 = inlined_call_operand.vmem [shape: f32[16,128], index: 0, kind: input, shape index: {}]
  %s1 = inlined_call_operand.vmem [shape: f32[1,128], index: 1, kind: input, shape index: {}]
  %s2 = inlined_call_operand.vmem [shape: f32[1,128], index: 2, kind: input, shape index: {}]
  %s3 = inlined_call_operand.vmem [shape: bf16[16,128], index: 3, kind: output, shape index: {}]
  %s4 = sld [smem:[#allocation0]]
  $region22: #{bert_forward.11} parent=0
    _
  %s6 = ssub.s32 1, %s4
  %s7 = scalar_select 0, %s6, %s4
  // Predicated region
  $region2: #{bert_forward.11} parent=0 // pred_check
    _
  $region3: #{bert_forward.11} parent=0 // pred_check_branch
    %9 = sbr.rel (0) target = $region5
  $region4: #{bert_forward.11} parent=0 // pred_region
    _
  $region5: #{bert_forward.11} parent=0 // pred_fallthru
    _
  // Predicated region
  $region6: #{bert_forward.11} parent=0 // pred_check
    _
  $region7: #{bert_forward.11} parent=0 // pred_check_branch
    %11 = sbr.rel (0) target = $region9
  $region8: #{bert_forward.11} parent=0 // pred_region
    _
  $region9: #{bert_forward.11} parent=0 // pred_fallthru
    _
  // Predicated region
  $region10: #{bert_forward.11} parent=0 // pred_check
    _
  $region11: #{bert_forward.11} parent=0 // pred_check_branch
    %13 = sbr.rel (0) target = $region13
  $region12: #{bert_forward.11} parent=0 // pred_region
    _
  $region13: #{bert_forward.11} parent=0 // pred_fallthru
    _
  %v14 = vld [vmem:[%s0] sm:$0xff]
  %v15 = vld [vmem:[%s0 + $0x8] sm:$0xff]
  %16 = vadd.xlane.f32.xlu0 %v14
  %v17 = vpop.xlane.xlu0 %16
  %18 = vadd.xlane.f32.xlu0 %v15
  %v19 = vpop.xlane.xlu0 %18
  %v20 = vrcp.pop 128.0
  %v21 = vmul.f32 128.0, %v20
  %v22 = vsub.f32 1.0, %v21
  %v23 = vmul.f32 %v20, %v22
  %v24 = vadd.f32 %v20, %v23
  %vm25 = vweird.f32 %v20
  %v26 = vsel %vm25, %v20, %v24
  %v27 = vmul.f32 %v17, %v26
  %v28 = vmul.f32 %v19, %v26
  %v29 = vsub.f32 %v14, %v27
  %v30 = vsub.f32 %v15, %v28
  %v31 = vmul.f32 %v29, %v29
  %v32 = vmul.f32 %v30, %v30
  %33 = vadd.xlane.f32.xlu0 %v31
  %v34 = vpop.xlane.xlu0 %33
  %35 = vadd.xlane.f32.xlu0 %v32
  %v36 = vpop.xlane.xlu0 %35
  %v37 = vmul.f32 %v34, %v26
  %v38 = vmul.f32 %v36, %v26
  %v39 = vadd.f32 %v37, 1e-05
  %v40 = vadd.f32 %v38, 1e-05
  %v41 = vrsqrt.pop %v39
  %v42 = vmul.f32 %v41, %v39
  %v43 = vmul.f32 %v42, %v41
  %v44 = vmul.f32 0.5, %v43
  %v45 = vsub.f32 1.5, %v44
  %v46 = vmul.f32 %v41, %v45
  %vm47 = vweird.f32 %v39
  %vm48 = vweird.f32 %v41
  %vm49 = vmor %vm47, %vm48
  %v50 = vsel %vm49, %v41, %v46
  %v51 = vrsqrt.pop %v40
  %v52 = vmul.f32 %v51, %v40
  %v53 = vmul.f32 %v52, %v51
  %v54 = vmul.f32 0.5, %v53
  %v55 = vsub.f32 1.5, %v54
  %v56 = vmul.f32 %v51, %v55
  %vm57 = vweird.f32 %v40
  %vm58 = vweird.f32 %v51
  %vm59 = vmor %vm57, %vm58
  %v60 = vsel %vm59, %v51, %v56
  %v61 = vmul.f32 %v29, %v50
  %v62 = vmul.f32 %v30, %v60
  %v63 = vld [vmem:[%s1] sm:$0x1]
  %v65 = vperm.slane %v63, 0
  %v67 = vmul.f32 %v61, %v65
  %v68 = vmul.f32 %v62, %v65
  %v69 = vld [vmem:[%s2] sm:$0x1]
  %v71 = vperm.slane %v69, 0
  %v73 = vadd.f32 %v67, %v71
  %v74 = vadd.f32 %v68, %v71
  %v75 = vpack.c.bf16 %v73, %v73
  %v76 = vpack.c.bf16 %v74, %v74
  %77 = vst [vmem:[%s3] sm:$0xf] %v75
  %78 = vst [vmem:[%s3 + $0x4] sm:$0xf] %v76
  // Predicated region
  $region14: #{bert_forward.11} parent=0 // pred_check
    _
  $region15: #{bert_forward.11} parent=0 // pred_check_branch
    %80 = sbr.rel (0) target = $region17
  $region16: #{bert_forward.11} parent=0 // pred_region
    _
  $region17: #{bert_forward.11} parent=0 // pred_fallthru
    _
  // Predicated region
  $region18: #{bert_forward.11} parent=0 // pred_check
    _
  $region19: #{bert_forward.11} parent=0 // pred_check_branch
    %82 = sbr.rel (0) target = $region21
  $region20: #{bert_forward.11} parent=0 // pred_region
    _
  $region21: #{bert_forward.11} parent=0 // pred_fallthru
    _

// kernel: bert_forward.14
$region0: #{bert_forward.14}
  #allocation0 [shape = 'u32[]', space=smem, size = 0x4, offset = 0x4, fixed_abs, tag = 'smem constant byte address 0x4 - core index']
  #allocation1 [shape = 'u32[72,128]{1,0:T(1,128)}', space=vmem, size = 0x9000, scoped, tag = 'internal scratch']
  #allocation2 [shape = 'f32[16,128]{1,0:T(8,128)}', space=vmem, size = 0x2000, scoped, tag = 'scratch operand']
  %s0 = inlined_call_operand.vmem [shape: bf16[16,128], index: 0, kind: input, shape index: {}]
  %s1 = inlined_call_operand.vmem [shape: bf16[128,128], index: 1, kind: input, shape index: {}]
  %s2 = inlined_call_operand.vmem [shape: f32[1,128], index: 2, kind: input, shape index: {}]
  %s3 = inlined_call_operand.vmem [shape: bf16[16,128], index: 3, kind: input, shape index: {}]
  %s4 = inlined_call_operand.vmem [shape: f32[1,128], index: 4, kind: input, shape index: {}]
  %s5 = inlined_call_operand.vmem [shape: f32[1,128], index: 5, kind: input, shape index: {}]
  %s6 = inlined_call_operand.vmem [shape: bf16[16,128], index: 6, kind: output, shape index: {}]
  %s7 = sld [smem:[#allocation0]]
  $region42: #{bert_forward.14} parent=0
    _
  %s9 = ssub.s32 1, %s7
  %s10 = scalar_select 0, %s9, %s7
  // Predicated region
  $region2: #{bert_forward.14} parent=0 // pred_check
    _
  $region3: #{bert_forward.14} parent=0 // pred_check_branch
    %12 = sbr.rel (0) target = $region5
  $region4: #{bert_forward.14} parent=0 // pred_region
    _
  $region5: #{bert_forward.14} parent=0 // pred_fallthru
    _
  // Predicated region
  $region6: #{bert_forward.14} parent=0 // pred_check
    _
  $region7: #{bert_forward.14} parent=0 // pred_check_branch
    %14 = sbr.rel (0) target = $region9
  $region8: #{bert_forward.14} parent=0 // pred_region
    _
  $region9: #{bert_forward.14} parent=0 // pred_fallthru
    _
  // Predicated region
  $region10: #{bert_forward.14} parent=0 // pred_check
    _
  $region11: #{bert_forward.14} parent=0 // pred_check_branch
    %16 = sbr.rel (0) target = $region13
  $region12: #{bert_forward.14} parent=0 // pred_region
    _
  $region13: #{bert_forward.14} parent=0 // pred_fallthru
    _
  // Predicated region
  $region14: #{bert_forward.14} parent=0 // pred_check
    _
  $region15: #{bert_forward.14} parent=0 // pred_check_branch
    %18 = sbr.rel (0) target = $region17
  $region16: #{bert_forward.14} parent=0 // pred_region
    _
  $region17: #{bert_forward.14} parent=0 // pred_fallthru
    _
  // Predicated region
  $region18: #{bert_forward.14} parent=0 // pred_check
    _
  $region19: #{bert_forward.14} parent=0 // pred_check_branch
    %20 = sbr.rel (0) target = $region21
  $region20: #{bert_forward.14} parent=0 // pred_region
    _
  $region21: #{bert_forward.14} parent=0 // pred_fallthru
    _
  // Predicated region
  $region22: #{bert_forward.14} parent=0 // pred_check
    _
  $region23: #{bert_forward.14} parent=0 // pred_check_branch
    %22 = sbr.rel (0) target = $region25
  $region24: #{bert_forward.14} parent=0 // pred_region
    _
  $region25: #{bert_forward.14} parent=0 // pred_fallthru
    _
  %p23 = scmp.eq.s32.totalorder 0, 0
  // Predicated region
  $region26: #{bert_forward.14} parent=0 // pred_check
    %p24 = pneg %p23
  $region27: #{bert_forward.14} parent=0 // pred_check_branch
    %26 = sbr.rel (%p24) target = $region29
  $region28: #{bert_forward.14} parent=0 // pred_region
    %27 = vst [vmem:[#allocation2] sm:$0xff] 0.0
    %28 = vst [vmem:[#allocation2 + $0x8] sm:$0xff] 0.0
  $region29: #{bert_forward.14} parent=0 // pred_fallthru
    _
  %v29 = vld [vmem:[#allocation2] sm:$0xff]
  %v30 = vld [vmem:[#allocation2 + $0x8] sm:$0xff]
  %v31 = vld [vmem:[%s0] sm:$0xf]
  %v32 = vld [vmem:[%s0 + $0x4] sm:$0xf]
  %v33 = vld [vmem:[%s1] sm:$0xf]
  %v34 = vld [vmem:[%s1 + $0x4] sm:$0xf]
  %v35 = vld [vmem:[%s1 + $0x8] sm:$0xf]
  %v36 = vld [vmem:[%s1 + $0xc] sm:$0xf]
  %v37 = vld [vmem:[%s1 + $0x10] sm:$0xf]
  %v38 = vld [vmem:[%s1 + $0x14] sm:$0xf]
  %v39 = vld [vmem:[%s1 + $0x18] sm:$0xf]
  %v40 = vld [vmem:[%s1 + $0x1c] sm:$0xf]
  %v41 = vld [vmem:[%s1 + $0x20] sm:$0xf]
  %v42 = vld [vmem:[%s1 + $0x24] sm:$0xf]
  %v43 = vld [vmem:[%s1 + $0x28] sm:$0xf]
  %v44 = vld [vmem:[%s1 + $0x2c] sm:$0xf]
  %v45 = vld [vmem:[%s1 + $0x30] sm:$0xf]
  %v46 = vld [vmem:[%s1 + $0x34] sm:$0xf]
  %v47 = vld [vmem:[%s1 + $0x38] sm:$0xf]
  %v48 = vld [vmem:[%s1 + $0x3c] sm:$0xf]
  %v51 = vunpack.c.l.b16 %v31
  %v52 = vunpack.c.l.b16 %v32
  %v53 = vpack.c.b16 %v52, %v51
  %v71 = vunpack.c.l.b16 %v33
  %v72 = vunpack.c.l.b16 %v34
  %v73 = vunpack.c.l.b16 %v35
  %v74 = vunpack.c.l.b16 %v36
  %v75 = vunpack.c.l.b16 %v37
  %v76 = vunpack.c.l.b16 %v38
  %v77 = vunpack.c.l.b16 %v39
  %v78 = vunpack.c.l.b16 %v40
  %v79 = vunpack.c.l.b16 %v41
  %v80 = vunpack.c.l.b16 %v42
  %v81 = vunpack.c.l.b16 %v43
  %v82 = vunpack.c.l.b16 %v44
  %v83 = vunpack.c.l.b16 %v45
  %v84 = vunpack.c.l.b16 %v46
  %v85 = vunpack.c.l.b16 %v47
  %v86 = vunpack.c.l.b16 %v48
  %v87 = vpack.c.b16 %v72, %v71
  %v88 = vpack.c.b16 %v74, %v73
  %v89 = vpack.c.b16 %v76, %v75
  %v90 = vpack.c.b16 %v78, %v77
  %v91 = vpack.c.b16 %v80, %v79
  %v92 = vpack.c.b16 %v82, %v81
  %v93 = vpack.c.b16 %v84, %v83
  %v94 = vpack.c.b16 %v86, %v85
  %103 = vmatpush.bf16.msra.mxu0 %v94
  %104 = vmatpush.bf16.msra.mxu0 %v93
  %105 = vmatpush.bf16.msra.mxu0 %v92
  %106 = vmatpush.bf16.msra.mxu0 %v91
  %107 = vmatpush.bf16.msra.mxu0 %v90
  %108 = vmatpush.bf16.msra.mxu0 %v89
  %109 = vmatpush.bf16.msra.mxu0 %v88
  %110 = vmatpush.bf16.msra.mxu0 %v87
  %111 = vmatmul.bf16.gmra.mxu0 %v53
  %v112 = vpop.f32.mrf.mxu0
  %v113 = vadd.f32 0.0, %v112
  %v114 = vpop.f32.mrf.mxu0
  %v115 = vadd.f32 0.0, %v114
  %116 = vdwg.mxu0
  %v117 = vadd.f32 %v29, %v113
  %v118 = vadd.f32 %v30, %v115
  %119 = vst [vmem:[#allocation2] sm:$0xff] %v117
  %120 = vst [vmem:[#allocation2 + $0x8] sm:$0xff] %v118
  // Predicated region
  $region30: #{bert_forward.14} parent=0 // pred_check
    %p121 = pneg %p23
  $region31: #{bert_forward.14} parent=0 // pred_check_branch
    %123 = sbr.rel (%p121) target = $region33
  $region32: #{bert_forward.14} parent=0 // pred_region
    %v124 = vld [vmem:[#allocation2] sm:$0xff]
    %v125 = vld [vmem:[#allocation2 + $0x8] sm:$0xff]
    %v126 = vld [vmem:[%s2] sm:$0x1]
    %v128 = vperm.slane %v126, 0
    %v130 = vadd.f32 %v124, %v128
    %v131 = vadd.f32 %v125, %v128
    %v132 = vld [vmem:[%s3] sm:$0xf]
    %v133 = vld [vmem:[%s3 + $0x4] sm:$0xf]
    %v134 = vunpack.c.l.bf16 %v132
    %v135 = vunpack.c.l.bf16 %v133
    %v136 = vadd.f32 %v130, %v134
    %v137 = vadd.f32 %v131, %v135
    %138 = vadd.xlane.f32.xlu0 %v136
    %v139 = vpop.xlane.xlu0 %138
    %140 = vadd.xlane.f32.xlu0 %v137
    %v141 = vpop.xlane.xlu0 %140
    %v142 = vrcp.pop 128.0
    %v143 = vmul.f32 128.0, %v142
    %v144 = vsub.f32 1.0, %v143
    %v145 = vmul.f32 %v142, %v144
    %v146 = vadd.f32 %v142, %v145
    %vm147 = vweird.f32 %v142
    %v148 = vsel %vm147, %v142, %v146
    %v149 = vmul.f32 %v139, %v148
    %v150 = vmul.f32 %v141, %v148
    %v151 = vsub.f32 %v136, %v149
    %v152 = vsub.f32 %v137, %v150
    %v153 = vmul.f32 %v151, %v151
    %v154 = vmul.f32 %v152, %v152
    %155 = vadd.xlane.f32.xlu0 %v153
    %v156 = vpop.xlane.xlu0 %155
    %157 = vadd.xlane.f32.xlu0 %v154
    %v158 = vpop.xlane.xlu0 %157
    %v159 = vmul.f32 %v156, %v148
    %v160 = vmul.f32 %v158, %v148
    %v161 = vadd.f32 %v159, 1e-05
    %v162 = vadd.f32 %v160, 1e-05
    %v163 = vrsqrt.pop %v161
    %v164 = vmul.f32 %v163, %v161
    %v165 = vmul.f32 %v164, %v163
    %v166 = vmul.f32 0.5, %v165
    %v167 = vsub.f32 1.5, %v166
    %v168 = vmul.f32 %v163, %v167
    %vm169 = vweird.f32 %v161
    %vm170 = vweird.f32 %v163
    %vm171 = vmor %vm169, %vm170
    %v172 = vsel %vm171, %v163, %v168
    %v173 = vrsqrt.pop %v162
    %v174 = vmul.f32 %v173, %v162
    %v175 = vmul.f32 %v174, %v173
    %v176 = vmul.f32 0.5, %v175
    %v177 = vsub.f32 1.5, %v176
    %v178 = vmul.f32 %v173, %v177
    %vm179 = vweird.f32 %v162
    %vm180 = vweird.f32 %v173
    %vm181 = vmor %vm179, %vm180
    %v182 = vsel %vm181, %v173, %v178
    %v183 = vmul.f32 %v151, %v172
    %v184 = vmul.f32 %v152, %v182
    %v185 = vld [vmem:[%s4] sm:$0x1]
    %v187 = vperm.slane %v185, 0
    %v189 = vmul.f32 %v183, %v187
    %v190 = vmul.f32 %v184, %v187
    %v191 = vld [vmem:[%s5] sm:$0x1]
    %v193 = vperm.slane %v191, 0
    %v195 = vadd.f32 %v189, %v193
    %v196 = vadd.f32 %v190, %v193
    %v197 = vpack.c.bf16 %v195, %v195
    %v198 = vpack.c.bf16 %v196, %v196
    %199 = vst [vmem:[%s6] sm:$0xf] %v197
    %200 = vst [vmem:[%s6 + $0x4] sm:$0xf] %v198
  $region33: #{bert_forward.14} parent=0 // pred_fallthru
    _
  // Predicated region
  $region34: #{bert_forward.14} parent=0 // pred_check
    _
  $region35: #{bert_forward.14} parent=0 // pred_check_branch
    %202 = sbr.rel (0) target = $region37
  $region36: #{bert_forward.14} parent=0 // pred_region
    _
  $region37: #{bert_forward.14} parent=0 // pred_fallthru
    _
  // Predicated region
  $region38: #{bert_forward.14} parent=0 // pred_check
    _
  $region39: #{bert_forward.14} parent=0 // pred_check_branch
    %204 = sbr.rel (0) target = $region41
  $region40: #{bert_forward.14} parent=0 // pred_region
    _
  $region41: #{bert_forward.14} parent=0 // pred_fallthru
    _

// kernel: bert_forward.13
$region0: #{bert_forward.13}
  #allocation0 [shape = 'u32[]', space=smem, size = 0x4, offset = 0x4, fixed_abs, tag = 'smem constant byte address 0x4 - core index']
  #allocation1 [shape = 'u32[72,128]{1,0:T(1,128)}', space=vmem, size = 0x9000, scoped, tag = 'internal scratch']
  %s0 = inlined_call_operand.vmem [shape: bf16[2,8,384], index: 0, kind: input, shape index: {}, may-alias: {0,1,2}]
  %s1 = inlined_call_operand.vmem [shape: bf16[2,8,384], index: 1, kind: input, shape index: {}, may-alias: {0,1,2}]
  %s2 = inlined_call_operand.vmem [shape: bf16[2,8,384], index: 2, kind: input, shape index: {}, may-alias: {0,1,2}]
  %s3 = inlined_call_operand.vmem [shape: f32[2,1,8], index: 3, kind: input, shape index: {}]
  %s4 = inlined_call_operand.vmem [shape: bf16[2,8,128], index: 4, kind: output, shape index: {}]
  %s5 = sld [smem:[#allocation0]]
  $region49: #{bert_forward.13} parent=0
    _
  %s7 = ssub.s32 1, %s5
  %s8 = scalar_select 0, %s7, %s5
  loop: start=0, step=1, limit=4
  $region2: #{bert_forward.13} parent=0 // loop_pre_header
    _
  $region3: #{bert_forward.13} parent=0 // loop_header
    %s10 = sphi 0, %s14
    %p11 = scmp.ge.s32.totalorder %s10, 4
    %s17 = sphi 0, %s36
    %s18 = sphi 0, %s32
    %s19 = sphi 0, %s28
    %s20 = sphi 0, %s17
    %s21 = sphi 0, %s18
    %s22 = sphi 0, %s19
    %s23 = sphi 0, %s20
    %s24 = sphi 0, %s21
    %s25 = sphi 0, %s22
    %s43 = sphi 0, %s45
    %s46 = sphi 0, %s43
    %s47 = sphi 0, %s46
    %s63 = sphi 0, %s47
    %s73 = sphi 0, %s75
    %s76 = sphi 0, %s73
    %s77 = sphi 0, %s76
    %s93 = sphi 0, %s77
    %s103 = sphi 0, %s105
    %s106 = sphi 0, %s103
    %s107 = sphi 0, %s106
    %s123 = sphi 0, %s107
    %s129 = sphi 0, %s131
    %s132 = sphi 0, %s129
    %s133 = sphi 0, %s132
    %s149 = sphi 0, %s133
    %s159 = sphi 0, %s161
    %s162 = sphi 0, %s159
    %s163 = sphi 0, %s162
    %s179 = sphi 0, %s163
  $region4: #{bert_forward.13} parent=0 // loop_header_branch
    %13 = sbr.rel (%p11) target = $region8
  $region5: #{bert_forward.13} parent=0 // loop_body
    %s15 = ssub.s32 %s10, 1
    %s16 = ssub.s32 %s10, 2
    %s26 = sadd.s32 1, %s19
    %p27 = scmp.ge.s32.totalorder %s26, 1
    %s28 = scalar_select %p27, 0, %s26
    %s29 = sadd.s32 1, %s18
    %s30 = scalar_select %p27, %s29, %s18
    %p31 = scmp.ge.s32.totalorder %s30, 1
    %s32 = scalar_select %p31, 0, %s30
    %s33 = sadd.s32 1, %s17
    %s34 = scalar_select %p31, %s33, %s17
    %p35 = scmp.ge.s32.totalorder %s34, 2
    %s36 = scalar_select %p35, 0, %s34
    %s37 = ssub.s32 %s17, %s36
    %s38 = ssub.s32 %s18, %s32
    %s39 = sor.u32 %s37, %s38
    %s40 = ssub.s32 %s19, %s28
    %s41 = sor.u32 %s39, %s40
    %p42 = scmp.eq.s32.totalorder %s41, 0
    %s44 = sadd.s32 %s43, 1
    %s45 = scalar_select %p42, %s43, %s44
    %p48 = pneg %p42
    %p49 = scmp.eq.s32.totalorder %s10, 1
    %p50 = por %p48, %p49
    %p51 = scmp.ne.s32.totalorder %s43, %s46
    %p52 = scmp.eq.s32.totalorder %s10, 0
    %p53 = por %p51, %p52
    %p54 = scmp.ne.s32.totalorder %s43, %s46
    %p55 = scmp.eq.s32.totalorder %s15, 1
    %p56 = por %p54, %p55
    %p57 = scmp.ne.s32.totalorder %s46, %s47
    %p58 = scmp.eq.s32.totalorder %s15, 0
    %p59 = por %p57, %p58
    %p60 = scmp.ne.s32.totalorder %s46, %s47
    %p61 = scmp.eq.s32.totalorder %s16, 1
    %p62 = por %p60, %p61
    %p64 = scmp.ne.s32.totalorder %s47, %s63
    %p65 = scmp.eq.s32.totalorder %s16, 0
    %p66 = por %p64, %p65
    %s67 = sadd.s32 %s19, 1
    %s68 = sadd.s32 %s28, 1
    %s69 = ssub.s32 %s17, %s36
    %s70 = ssub.s32 %s67, %s68
    %s71 = sor.u32 %s69, %s70
    %p72 = scmp.eq.s32.totalorder %s71, 0
    %s74 = sadd.s32 %s73, 1
    %s75 = scalar_select %p72, %s73, %s74
    %p78 = pneg %p72
    %p79 = scmp.eq.s32.totalorder %s10, 1
    %p80 = por %p78, %p79
    %p81 = scmp.ne.s32.totalorder %s73, %s76
    %p82 = scmp.eq.s32.totalorder %s10, 0
    %p83 = por %p81, %p82
    %p84 = scmp.ne.s32.totalorder %s73, %s76
    %p85 = scmp.eq.s32.totalorder %s15, 1
    %p86 = por %p84, %p85
    %p87 = scmp.ne.s32.totalorder %s76, %s77
    %p88 = scmp.eq.s32.totalorder %s15, 0
    %p89 = por %p87, %p88
    %p90 = scmp.ne.s32.totalorder %s76, %s77
    %p91 = scmp.eq.s32.totalorder %s16, 1
    %p92 = por %p90, %p91
    %p94 = scmp.ne.s32.totalorder %s77, %s93
    %p95 = scmp.eq.s32.totalorder %s16, 0
    %p96 = por %p94, %p95
    %s97 = sadd.s32 %s19, 2
    %s98 = sadd.s32 %s28, 2
    %s99 = ssub.s32 %s17, %s36
    %s100 = ssub.s32 %s97, %s98
    %s101 = sor.u32 %s99, %s100
    %p102 = scmp.eq.s32.totalorder %s101, 0
    %s104 = sadd.s32 %s103, 1
    %s105 = scalar_select %p102, %s103, %s104
    %p108 = pneg %p102
    %p109 = scmp.eq.s32.totalorder %s10, 1
    %p110 = por %p108, %p109
    %p111 = scmp.ne.s32.totalorder %s103, %s106
    %p112 = scmp.eq.s32.totalorder %s10, 0
    %p113 = por %p111, %p112
    %p114 = scmp.ne.s32.totalorder %s103, %s106
    %p115 = scmp.eq.s32.totalorder %s15, 1
    %p116 = por %p114, %p115
    %p117 = scmp.ne.s32.totalorder %s106, %s107
    %p118 = scmp.eq.s32.totalorder %s15, 0
    %p119 = por %p117, %p118
    %p120 = scmp.ne.s32.totalorder %s106, %s107
    %p121 = scmp.eq.s32.totalorder %s16, 1
    %p122 = por %p120, %p121
    %p124 = scmp.ne.s32.totalorder %s107, %s123
    %p125 = scmp.eq.s32.totalorder %s16, 0
    %p126 = por %p124, %p125
    %s127 = ssub.s32 %s17, %s36
    %p128 = scmp.eq.s32.totalorder %s127, 0
    %s130 = sadd.s32 %s129, 1
    %s131 = scalar_select %p128, %s129, %s130
    %p134 = pneg %p128
    %p135 = scmp.eq.s32.totalorder %s10, 1
    %p136 = por %p134, %p135
    %p137 = scmp.ne.s32.totalorder %s129, %s132
    %p138 = scmp.eq.s32.totalorder %s10, 0
    %p139 = por %p137, %p138
    %p140 = scmp.ne.s32.totalorder %s129, %s132
    %p141 = scmp.eq.s32.totalorder %s15, 1
    %p142 = por %p140, %p141
    %p143 = scmp.ne.s32.totalorder %s132, %s133
    %p144 = scmp.eq.s32.totalorder %s15, 0
    %p145 = por %p143, %p144
    %p146 = scmp.ne.s32.totalorder %s132, %s133
    %p147 = scmp.eq.s32.totalorder %s16, 1
    %p148 = por %p146, %p147
    %p150 = scmp.ne.s32.totalorder %s133, %s149
    %p151 = scmp.eq.s32.totalorder %s16, 0
    %p152 = por %p150, %p151
    %s153 = ssub.s32 %s17, %s36
    %s154 = ssub.s32 %s18, %s32
    %s155 = sor.u32 %s153, %s154
    %s156 = ssub.s32 %s19, %s28
    %s157 = sor.u32 %s155, %s156
    %p158 = scmp.eq.s32.totalorder %s157, 0
    %s160 = sadd.s32 %s159, 1
    %s161 = scalar_select %p158, %s159, %s160
    %p164 = pneg %p158
    %p165 = scmp.eq.s32.totalorder %s10, 1
    %p166 = por %p164, %p165
    %p167 = scmp.ne.s32.totalorder %s159, %s162
    %p168 = scmp.eq.s32.totalorder %s10, 0
    %p169 = por %p167, %p168
    %p170 = scmp.ne.s32.totalorder %s159, %s162
    %p171 = scmp.eq.s32.totalorder %s15, 1
    %p172 = por %p170, %p171
    %p173 = scmp.ne.s32.totalorder %s162, %s163
    %p174 = scmp.eq.s32.totalorder %s15, 0
    %p175 = por %p173, %p174
    %p176 = scmp.ne.s32.totalorder %s162, %s163
    %p177 = scmp.eq.s32.totalorder %s16, 1
    %p178 = por %p176, %p177
    %p180 = scmp.ne.s32.totalorder %s163, %s179
    %p181 = scmp.eq.s32.totalorder %s16, 0
    %p182 = por %p180, %p181
    %p183 = scmp.le.s32.totalorder 1, %s10
    %p184 = scmp.lt.s32.totalorder %s10, 3
    %p185 = pnand %p183, %p184
    %p186 = pneg %p185
    // Predicated region
    $region9: #{bert_forward.13} parent=5 // pred_check
      _
    $region10: #{bert_forward.13} parent=5 // pred_check_branch
      %188 = sbr.rel (%p185) target = $region12
    $region11: #{bert_forward.13} parent=5 // pred_region
      %s189 = ssub.s32 %s10, 1
    $region12: #{bert_forward.13} parent=5 // pred_fallthru
      _
    %p190 = scmp.lt.s32.totalorder %s10, 2
    // Predicated region
    $region13: #{bert_forward.13} parent=5 // pred_check
      %p191 = pneg %p190
    $region14: #{bert_forward.13} parent=5 // pred_check_branch
      %193 = sbr.rel (%p191) target = $region16
    $region15: #{bert_forward.13} parent=5 // pred_region
      // Predicated region
      $region17: #{bert_forward.13} parent=15 // pred_check
        %p194 = pneg %p53
      $region18: #{bert_forward.13} parent=15 // pred_check_branch
        %196 = sbr.rel (%p194) target = $region20
      $region19: #{bert_forward.13} parent=15 // pred_region
        %p197 = scmp.lt.s32.totalorder %s17, 1
        %s198 = scalar_select %p197, %s17, 1
        %p199 = scmp.lt.s32.totalorder %s18, 0
        %s200 = scalar_select %p199, %s18, 0
        %p201 = scmp.lt.s32.totalorder %s19, 2
        %s202 = scalar_select %p201, %s19, 2
        %s203 = smul.addr %s200, 3
        %s204 = sadd.s32 %s202, %s203
        %s205 = smul.addr %s198, 3
        %s206 = sadd.s32 %s204, %s205
        %s207 = smul.addr %s206, 4
        %s208 = scalar_lea.vmem %s0, %s207
      $region20: #{bert_forward.13} parent=15 // pred_fallthru
        _
      // Predicated region
      $region21: #{bert_forward.13} parent=15 // pred_check
        %p209 = pneg %p83
      $region22: #{bert_forward.13} parent=15 // pred_check_branch
        %211 = sbr.rel (%p209) target = $region24
      $region23: #{bert_forward.13} parent=15 // pred_region
        %s212 = sadd.s32 %s19, 1
        %p213 = scmp.lt.s32.totalorder %s17, 1
        %s214 = scalar_select %p213, %s17, 1
        %p215 = scmp.lt.s32.totalorder %s212, 2
        %s216 = scalar_select %p215, %s212, 2
        %s217 = smul.addr %s214, 3
        %s218 = sadd.s32 %s216, %s217
        %s219 = smul.addr %s218, 4
        %s220 = scalar_lea.vmem %s1, %s219
        %s221 = sadd.s32 %s19, 1
      $region24: #{bert_forward.13} parent=15 // pred_fallthru
        _
      // Predicated region
      $region25: #{bert_forward.13} parent=15 // pred_check
        %p222 = pneg %p113
      $region26: #{bert_forward.13} parent=15 // pred_check_branch
        %224 = sbr.rel (%p222) target = $region28
      $region27: #{bert_forward.13} parent=15 // pred_region
        %s225 = sadd.s32 %s19, 2
        %p226 = scmp.lt.s32.totalorder %s17, 1
        %s227 = scalar_select %p226, %s17, 1
        %p228 = scmp.lt.s32.totalorder %s225, 2
        %s229 = scalar_select %p228, %s225, 2
        %s230 = smul.addr %s227, 3
        %s231 = sadd.s32 %s229, %s230
        %s232 = smul.addr %s231, 4
        %s233 = scalar_lea.vmem %s2, %s232
        %s234 = sadd.s32 %s19, 2
      $region28: #{bert_forward.13} parent=15 // pred_fallthru
        _
      // Predicated region
      $region29: #{bert_forward.13} parent=15 // pred_check
        %p235 = pneg %p139
      $region30: #{bert_forward.13} parent=15 // pred_check_branch
        %237 = sbr.rel (%p235) target = $region32
      $region31: #{bert_forward.13} parent=15 // pred_region
        %p238 = scmp.lt.s32.totalorder %s17, 1
        %s239 = scalar_select %p238, %s17, 1
        %s240 = scalar_lea.vmem %s3, %s239
      $region32: #{bert_forward.13} parent=15 // pred_fallthru
        _
    $region16: #{bert_forward.13} parent=5 // pred_fallthru
      _
    %p241 = scmp.le.s32.totalorder 1, %s10
    %p242 = scmp.lt.s32.totalorder %s10, 3
    %p243 = pnand %p241, %p242
    %p244 = pneg %p243
    // Predicated region
    $region33: #{bert_forward.13} parent=5 // pred_check
      _
    $region34: #{bert_forward.13} parent=5 // pred_check_branch
      %246 = sbr.rel (%p243) target = $region36
    $region35: #{bert_forward.13} parent=5 // pred_region
      %s247 = ssub.s32 %s10, 1
      %p248 = scmp.lt.s32.totalorder %s20, 1
      %s249 = scalar_select %p248, %s20, 1
      %p250 = scmp.lt.s32.totalorder %s21, 0
      %s251 = scalar_select %p250, %s21, 0
      %p252 = scmp.lt.s32.totalorder %s22, 2
      %s253 = scalar_select %p252, %s22, 2
      %s254 = smul.addr %s251, 3
      %s255 = sadd.s32 %s253, %s254
      %s256 = smul.addr %s249, 3
      %s257 = sadd.s32 %s255, %s256
      %s258 = smul.addr %s257, 4
      %s259 = scalar_lea.vmem %s0, %s258
      %p260 = pneg %p59
      %p261 = pneg %p56
      %s262 = sadd.s32 %s22, 1
      %p263 = scmp.lt.s32.totalorder %s20, 1
      %s264 = scalar_select %p263, %s20, 1
      %p265 = scmp.lt.s32.totalorder %s262, 2
      %s266 = scalar_select %p265, %s262, 2
      %s267 = smul.addr %s264, 3
      %s268 = sadd.s32 %s266, %s267
      %s269 = smul.addr %s268, 4
      %s270 = scalar_lea.vmem %s1, %s269
      %p271 = pneg %p89
      %p272 = pneg %p86
      %s273 = sadd.s32 %s22, 2
      %p274 = scmp.lt.s32.totalorder %s20, 1
      %s275 = scalar_select %p274, %s20, 1
      %p276 = scmp.lt.s32.totalorder %s273, 2
      %s277 = scalar_select %p276, %s273, 2
      %s278 = smul.addr %s275, 3
      %s279 = sadd.s32 %s277, %s278
      %s280 = smul.addr %s279, 4
      %s281 = scalar_lea.vmem %s2, %s280
      %p282 = pneg %p119
      %p283 = pneg %p116
      %p284 = scmp.lt.s32.totalorder %s20, 1
      %s285 = scalar_select %p284, %s20, 1
      %s286 = scalar_lea.vmem %s3, %s285
      %p287 = pneg %p145
      %p288 = pneg %p142
      %p289 = pneg %p175
      %p290 = pneg %p172
      %p291 = scmp.lt.s32.totalorder %s20, 1
      %s292 = scalar_select %p291, %s20, 1
      %p293 = scmp.lt.s32.totalorder %s21, 0
      %s294 = scalar_select %p293, %s21, 0
      %p295 = scmp.lt.s32.totalorder %s22, 0
      %s296 = scalar_select %p295, %s22, 0
      %s297 = sadd.s32 %s296, %s294
      %s298 = sadd.s32 %s297, %s292
      %s299 = smul.addr %s298, 4
      %s300 = scalar_lea.vmem %s4, %s299
      %p301 = scmp.lt.s32.totalorder %s20, 1
      %s302 = scalar_select %p301, %s20, 1
      %p303 = scmp.lt.s32.totalorder %s21, 0
      %s304 = scalar_select %p303, %s21, 0
      %p305 = scmp.lt.s32.totalorder %s22, 2
      %s306 = scalar_select %p305, %s22, 2
      %s307 = smul.addr %s304, 3
      %s308 = sadd.s32 %s306, %s307
      %s309 = smul.addr %s302, 3
      %s310 = sadd.s32 %s308, %s309
      %s311 = smul.addr %s310, 4
      %s312 = scalar_lea.vmem %s0, %s311
      %s313 = sadd.s32 %s22, 1
      %p314 = scmp.lt.s32.totalorder %s20, 1
      %s315 = scalar_select %p314, %s20, 1
      %p316 = scmp.lt.s32.totalorder %s313, 2
      %s317 = scalar_select %p316, %s313, 2
      %s318 = smul.addr %s315, 3
      %s319 = sadd.s32 %s317, %s318
      %s320 = smul.addr %s319, 4
      %s321 = scalar_lea.vmem %s1, %s320
      %s322 = sadd.s32 %s22, 1
      %s323 = sadd.s32 %s22, 2
      %p324 = scmp.lt.s32.totalorder %s20, 1
      %s325 = scalar_select %p324, %s20, 1
      %p326 = scmp.lt.s32.totalorder %s323, 2
      %s327 = scalar_select %p326, %s323, 2
      %s328 = smul.addr %s325, 3
      %s329 = sadd.s32 %s327, %s328
      %s330 = smul.addr %s329, 4
      %s331 = scalar_lea.vmem %s2, %s330
      %s332 = sadd.s32 %s22, 2
      %p333 = scmp.lt.s32.totalorder %s20, 1
      %s334 = scalar_select %p333, %s20, 1
      %s335 = scalar_lea.vmem %s3, %s334
      %p336 = scmp.lt.s32.totalorder %s20, 1
      %s337 = scalar_select %p336, %s20, 1
      %p338 = scmp.lt.s32.totalorder %s21, 0
      %s339 = scalar_select %p338, %s21, 0
      %p340 = scmp.lt.s32.totalorder %s22, 0
      %s341 = scalar_select %p340, %s22, 0
      %s342 = sadd.s32 %s341, %s339
      %s343 = sadd.s32 %s342, %s337
      %s344 = smul.addr %s343, 4
      %s345 = scalar_lea.vmem %s4, %s344
      %v347 = vld [vmem:[%s312] sm:$0xf]
      %v348 = vunpack.c.l.bf16 %v347
      %v349 = vmul.f32 %v348, 0.17675781
      %v350 = vpack.c.bf16 %v349, %v349
      %v351 = vld [vmem:[%s321] sm:$0xf]
      %v352 = vld [vmem:[%s331] sm:$0xf]
      %v353 = vld [vmem:[%s335] sm:$0x1]
      %v355 = vperm.slane %v353, 0
      %vm357 = vcmask 261120
      %v359 = vsel %vm357, %v350, 0
      %v362 = vsel %vm357, %v351, 0
      %364 = vmatpush.bf16.xpose.msra.mxu0 0
      %365 = vmatpush.bf16.xpose.msra.mxu0 0
      %366 = vmatpush.bf16.xpose.msra.mxu0 0
      %367 = vmatpush.bf16.xpose.msra.mxu0 0
      %368 = vmatpush.bf16.xpose.msra.mxu0 0
      %369 = vmatpush.bf16.xpose.msra.mxu0 0
      %370 = vmatpush.bf16.xpose.msra.mxu0 0
      %371 = vmatpush.bf16.xpose.msra.mxu0 %v362
      %372 = vmatmul.bf16.gmra.mxu0 %v359
      %v373 = vpop.f32.mrf.mxu0
      %v374 = vadd.f32 %v355, %v373
      %v375 = vpop.f32.mrf.mxu0
      %376 = vdwg.mxu0
      %vm377 = vcmask 64512
      %v378 = vsel %vm377, %v374, -inf
      %379 = vmax.xlane.f32.xlu0 %v378
      %v380 = vpop.xlane.xlu0 %379
      %v381 = vsub.f32 %v374, %v380
      %v382 = vmul.f32 %v381, 1.442695
      %v383 = vpow.pop %v382
      %v384 = vsel %vm377, %v383, 0.0
      %385 = vadd.xlane.f32.xlu0 %v384
      %v386 = vpop.xlane.xlu0 %385
      %v387 = vrcp.pop %v386
      %v388 = vmul.f32 %v383, %v387
      %v389 = vpack.c.bf16 %v388, %v388
      %v391 = vsel %vm377, %v389, 0
      %vm393 = vcmask 1043456
      %v395 = vsel %vm393, %v352, 0
      %397 = vmatpush.bf16.msra.mxu0 0
      %398 = vmatpush.bf16.msra.mxu0 0
      %399 = vmatpush.bf16.msra.mxu0 0
      %400 = vmatpush.bf16.msra.mxu0 0
      %401 = vmatpush.bf16.msra.mxu0 0
      %402 = vmatpush.bf16.msra.mxu0 0
      %403 = vmatpush.bf16.msra.mxu0 0
      %404 = vmatpush.bf16.msra.mxu0 %v395
      %405 = vmatmul.bf16.gmra.mxu0 %v391
      %v406 = vpop.f32.mrf.mxu0
      %v407 = vadd.f32 0.0, %v406
      %v408 = vpop.f32.mrf.mxu0
      %409 = vdwg.mxu0
      %v411 = vunpack.c.l.b16 %v350
      %v412 = vpack.c.b16 %v411, %v411
      %413 = vrot.lane.b32.xlu0 %v412, 96
      %v414 = vpop.permute.xlu0 %413
      %v416 = vunpack.c.l.b16 %v351
      %v417 = vpack.c.b16 %v416, %v416
      %418 = vrot.lane.b32.xlu0 %v417, 96
      %v419 = vpop.permute.xlu0 %418
      %v421 = vsel %vm357, %v414, 0
      %v424 = vsel %vm357, %v419, 0
      %426 = vmatpush.bf16.xpose.msra.mxu0 0
      %427 = vmatpush.bf16.xpose.msra.mxu0 0
      %428 = vmatpush.bf16.xpose.msra.mxu0 0
      %429 = vmatpush.bf16.xpose.msra.mxu0 0
      %430 = vmatpush.bf16.xpose.msra.mxu0 0
      %431 = vmatpush.bf16.xpose.msra.mxu0 0
      %432 = vmatpush.bf16.xpose.msra.mxu0 0
      %433 = vmatpush.bf16.xpose.msra.mxu0 %v424
      %434 = vmatmul.bf16.gmra.mxu0 %v421
      %v435 = vpop.f32.mrf.mxu0
      %v436 = vadd.f32 %v355, %v435
      %v437 = vpop.f32.mrf.mxu0
      %438 = vdwg.mxu0
      %v439 = vsel %vm377, %v436, -inf
      %440 = vmax.xlane.f32.xlu0 %v439
      %v441 = vpop.xlane.xlu0 %440
      %v442 = vsub.f32 %v436, %v441
      %v443 = vmul.f32 %v442, 1.442695
      %v444 = vpow.pop %v443
      %v445 = vsel %vm377, %v444, 0.0
      %446 = vadd.xlane.f32.xlu0 %v445
      %v447 = vpop.xlane.xlu0 %446
      %v448 = vrcp.pop %v447
      %v449 = vmul.f32 %v444, %v448
      %v450 = vpack.c.bf16 %v449, %v449
      %v452 = vunpack.c.l.b16 %v352
      %v453 = vpack.c.b16 %v452, %v452
      %454 = vrot.lane.b32.xlu0 %v453, 96
      %v455 = vpop.permute.xlu0 %454
      %v457 = vsel %vm377, %v450, 0
      %v460 = vsel %vm393, %v455, 0
      %462 = vmatpush.bf16.msra.mxu0 0
      %463 = vmatpush.bf16.msra.mxu0 0
      %464 = vmatpush.bf16.msra.mxu0 0
      %465 = vmatpush.bf16.msra.mxu0 0
      %466 = vmatpush.bf16.msra.mxu0 0
      %467 = vmatpush.bf16.msra.mxu0 0
      %468 = vmatpush.bf16.msra.mxu0 0
      %469 = vmatpush.bf16.msra.mxu0 %v460
      %470 = vmatmul.bf16.gmra.mxu0 %v457
      %v471 = vpop.f32.mrf.mxu0
      %v472 = vadd.f32 0.0, %v471
      %v473 = vpop.f32.mrf.mxu0
      %474 = vdwg.mxu0
      %475 = vrot.lane.b32.xlu0 %v412, 64
      %v476 = vpop.permute.xlu0 %475
      %477 = vrot.lane.b32.xlu0 %v417, 64
      %v478 = vpop.permute.xlu0 %477
      %v480 = vsel %vm357, %v476, 0
      %v483 = vsel %vm357, %v478, 0
      %485 = vmatpush.bf16.xpose.msra.mxu0 0
      %486 = vmatpush.bf16.xpose.msra.mxu0 0
      %487 = vmatpush.bf16.xpose.msra.mxu0 0
      %488 = vmatpush.bf16.xpose.msra.mxu0 0
      %489 = vmatpush.bf16.xpose.msra.mxu0 0
      %490 = vmatpush.bf16.xpose.msra.mxu0 0
      %491 = vmatpush.bf16.xpose.msra.mxu0 0
      %492 = vmatpush.bf16.xpose.msra.mxu0 %v483
      %493 = vmatmul.bf16.gmra.mxu0 %v480
      %v494 = vpop.f32.mrf.mxu0
      %v495 = vadd.f32 %v355, %v494
      %v496 = vpop.f32.mrf.mxu0
      %497 = vdwg.mxu0
      %v498 = vsel %vm377, %v495, -inf
      %499 = vmax.xlane.f32.xlu0 %v498
      %v500 = vpop.xlane.xlu0 %499
      %v501 = vsub.f32 %v495, %v500
      %v502 = vmul.f32 %v501, 1.442695
      %v503 = vpow.pop %v502
      %v504 = vsel %vm377, %v503, 0.0
      %505 = vadd.xlane.f32.xlu0 %v504
      %v506 = vpop.xlane.xlu0 %505
      %v507 = vrcp.pop %v506
      %v508 = vmul.f32 %v503, %v507
      %v509 = vpack.c.bf16 %v508, %v508
      %510 = vrot.lane.b32.xlu0 %v453, 64
      %v511 = vpop.permute.xlu0 %510
      %v513 = vsel %vm377, %v509, 0
      %v516 = vsel %vm393, %v511, 0
      %518 = vmatpush.bf16.msra.mxu0 0
      %519 = vmatpush.bf16.msra.mxu0 0
      %520 = vmatpush.bf16.msra.mxu0 0
      %521 = vmatpush.bf16.msra.mxu0 0
      %522 = vmatpush.bf16.msra.mxu0 0
      %523 = vmatpush.bf16.msra.mxu0 0
      %524 = vmatpush.bf16.msra.mxu0 0
      %525 = vmatpush.bf16.msra.mxu0 %v516
      %526 = vmatmul.bf16.gmra.mxu0 %v513
      %v527 = vpop.f32.mrf.mxu0
      %v528 = vadd.f32 0.0, %v527
      %v529 = vpop.f32.mrf.mxu0
      %530 = vdwg.mxu0
      %531 = vrot.lane.b32.xlu0 %v412, 32
      %v532 = vpop.permute.xlu0 %531
      %533 = vrot.lane.b32.xlu0 %v417, 32
      %v534 = vpop.permute.xlu0 %533
      %v536 = vsel %vm357, %v532, 0
      %v539 = vsel %vm357, %v534, 0
      %541 = vmatpush.bf16.xpose.msra.mxu0 0
      %542 = vmatpush.bf16.xpose.msra.mxu0 0
      %543 = vmatpush.bf16.xpose.msra.mxu0 0
      %544 = vmatpush.bf16.xpose.msra.mxu0 0
      %545 = vmatpush.bf16.xpose.msra.mxu0 0
      %546 = vmatpush.bf16.xpose.msra.mxu0 0
      %547 = vmatpush.bf16.xpose.msra.mxu0 0
      %548 = vmatpush.bf16.xpose.msra.mxu0 %v539
      %549 = vmatmul.bf16.gmra.mxu0 %v536
      %v550 = vpop.f32.mrf.mxu0
      %v551 = vadd.f32 %v355, %v550
      %v552 = vpop.f32.mrf.mxu0
      %553 = vdwg.mxu0
      %v554 = vsel %vm377, %v551, -inf
      %555 = vmax.xlane.f32.xlu0 %v554
      %v556 = vpop.xlane.xlu0 %555
      %v557 = vsub.f32 %v551, %v556
      %v558 = vmul.f32 %v557, 1.442695
      %v559 = vpow.pop %v558
      %v560 = vsel %vm377, %v559, 0.0
      %561 = vadd.xlane.f32.xlu0 %v560
      %v562 = vpop.xlane.xlu0 %561
      %v563 = vrcp.pop %v562
      %v564 = vmul.f32 %v559, %v563
      %v565 = vpack.c.bf16 %v564, %v564
      %566 = vrot.lane.b32.xlu0 %v453, 32
      %v567 = vpop.permute.xlu0 %566
      %v569 = vsel %vm377, %v565, 0
      %v572 = vsel %vm393, %v567, 0
      %574 = vmatpush.bf16.msra.mxu0 0
      %575 = vmatpush.bf16.msra.mxu0 0
      %576 = vmatpush.bf16.msra.mxu0 0
      %577 = vmatpush.bf16.msra.mxu0 0
      %578 = vmatpush.bf16.msra.mxu0 0
      %579 = vmatpush.bf16.msra.mxu0 0
      %580 = vmatpush.bf16.msra.mxu0 0
      %581 = vmatpush.bf16.msra.mxu0 %v572
      %582 = vmatmul.bf16.gmra.mxu0 %v569
      %v583 = vpop.f32.mrf.mxu0
      %v584 = vadd.f32 0.0, %v583
      %v585 = vpop.f32.mrf.mxu0
      %586 = vdwg.mxu0
      %588 = vrot.lane.b32.xlu0 %v472, 32
      %v589 = vpop.permute.xlu0 %588
      %592 = vrot.lane.b32.xlu0 %v528, 64
      %v593 = vpop.permute.xlu0 %592
      %596 = vrot.lane.b32.xlu0 %v584, 96
      %v597 = vpop.permute.xlu0 %596
      %v599 = vsel %vm357, %v407, %v589
      %vm600 = vcmask 523264
      %v601 = vsel %vm600, %v599, %v593
      %vm602 = vcmask 785408
      %v603 = vsel %vm602, %v601, %v597
      %v604 = vpack.c.bf16 %v603, %v603
      %605 = vst [vmem:[%s345] sm:$0xf] %v604
      %p606 = scmp.lt.s32.totalorder %s20, 1
      %s607 = scalar_select %p606, %s20, 1
      %p608 = scmp.lt.s32.totalorder %s21, 0
      %s609 = scalar_select %p608, %s21, 0
      %p610 = scmp.lt.s32.totalorder %s22, 0
      %s611 = scalar_select %p610, %s22, 0
      %s612 = sadd.s32 %s611, %s609
      %s613 = sadd.s32 %s612, %s607
      %s614 = smul.addr %s613, 4
      %s615 = scalar_lea.vmem %s4, %s614
      // Predicated region
      $region37: #{bert_forward.13} parent=35 // pred_check
        %p616 = pneg %p172
      $region38: #{bert_forward.13} parent=35 // pred_check_branch
        %618 = sbr.rel (%p616) target = $region40
      $region39: #{bert_forward.13} parent=35 // pred_region
        _
      $region40: #{bert_forward.13} parent=35 // pred_fallthru
        _
    $region36: #{bert_forward.13} parent=5 // pred_fallthru
      _
    %p619 = scmp.le.s32.totalorder 2, %s10
    // Predicated region
    $region41: #{bert_forward.13} parent=5 // pred_check
      %p620 = pneg %p619
    $region42: #{bert_forward.13} parent=5 // pred_check_branch
      %622 = sbr.rel (%p620) target = $region44
    $region43: #{bert_forward.13} parent=5 // pred_region
      %s623 = ssub.s32 %s10, 2
      // Predicated region
      $region45: #{bert_forward.13} parent=43 // pred_check
        %p624 = pneg %p178
      $region46: #{bert_forward.13} parent=43 // pred_check_branch
        %626 = sbr.rel (%p624) target = $region48
      $region47: #{bert_forward.13} parent=43 // pred_region
        %p627 = scmp.lt.s32.totalorder %s23, 1
        %s628 = scalar_select %p627, %s23, 1
        %p629 = scmp.lt.s32.totalorder %s24, 0
        %s630 = scalar_select %p629, %s24, 0
        %p631 = scmp.lt.s32.totalorder %s25, 0
        %s632 = scalar_select %p631, %s25, 0
        %s633 = sadd.s32 %s632, %s630
        %s634 = sadd.s32 %s633, %s628
        %s635 = smul.addr %s634, 4
        %s636 = scalar_lea.vmem %s4, %s635
      $region48: #{bert_forward.13} parent=43 // pred_fallthru
        _
    $region44: #{bert_forward.13} parent=5 // pred_fallthru
      _
  $region6: #{bert_forward.13} parent=0 // loop_footer
    %s14 = sadd.s32 1, %s10
  $region7: #{bert_forward.13} parent=0 // loop_footer_branch
    %9 = sbr.rel target = $region3
  $region8: #{bert_forward.13} parent=0 // loop_exit
    _

// kernel: bert_forward.12
$region0: #{bert_forward.12}
  #allocation0 [shape = 'u32[]', space=smem, size = 0x4, offset = 0x4, fixed_abs, tag = 'smem constant byte address 0x4 - core index']
  #allocation1 [shape = 'u32[72,128]{1,0:T(1,128)}', space=vmem, size = 0x9000, scoped, tag = 'internal scratch']
  #allocation2 [shape = 'f32[16,384]{1,0:T(8,128)}', space=vmem, size = 0x6000, scoped, tag = 'scratch operand']
  %s0 = inlined_call_operand.vmem [shape: bf16[16,128], index: 0, kind: input, shape index: {}]
  %s1 = inlined_call_operand.hbm [shape: bf16[128,384], index: 1, kind: input, shape index: {}]
  %s2 = inlined_call_operand.vmem [shape: f32[1,384], index: 2, kind: input, shape index: {}]
  %s3 = inlined_call_operand.vmem [shape: bf16[16,384], index: 3, kind: output, shape index: {}]
  %s4 = sld [smem:[#allocation0]]
  $region34: #{bert_forward.12} parent=0
    _
  %s6 = ssub.s32 1, %s4
  %s7 = scalar_select 0, %s6, %s4
  $region1: #{bert_forward.12} parent=0
    #allocation3 [shape = 'u8[98304]{0}', space=vmem, size = 0x18000, scoped, tag = 'input window, operand 1, single buffered']
    #allocation4 [shape = 's32[1]{0}', space=sflag, size = 0x4, scoped, tag = 'scoped memory for bert_forward.12']
    %8 = vsyncpa [#allocation4], 0
    // Predicated region
    $region2: #{bert_forward.12} parent=1 // pred_check
      _
    $region3: #{bert_forward.12} parent=1 // pred_check_branch
      %10 = sbr.rel (0) target = $region5
    $region4: #{bert_forward.12} parent=1 // pred_region
      _
    $region5: #{bert_forward.12} parent=1 // pred_fallthru
      _
    // Predicated region
    $region6: #{bert_forward.12} parent=1 // pred_check
      _
    $region7: #{bert_forward.12} parent=1 // pred_check_branch
      %12 = sbr.rel (0) target = $region9
    $region8: #{bert_forward.12} parent=1 // pred_region
      %14 = vsyncadd [#allocation4], 0
      %s15 = sshll.u32 %s1, 4
      %s16 = int_to_ptr.hbm [resolvable:$true] %s15
      %s17 = sshll.u32 [#allocation3], 4
      %s18 = int_to_ptr.vmem [resolvable:$true] %s17
      %23 = dma.hbm_to_vmem [thread:$0]  %s16, 3072, %s18, [#allocation4], 192, 192, 12
    $region9: #{bert_forward.12} parent=1 // pred_fallthru
      _
    // Predicated region
    $region10: #{bert_forward.12} parent=1 // pred_check
      _
    $region11: #{bert_forward.12} parent=1 // pred_check_branch
      %25 = sbr.rel (0) target = $region13
    $region12: #{bert_forward.12} parent=1 // pred_region
      _
    $region13: #{bert_forward.12} parent=1 // pred_fallthru
      _
    // Predicated region
    $region14: #{bert_forward.12} parent=1 // pred_check
      _
    $region15: #{bert_forward.12} parent=1 // pred_check_branch
      %27 = sbr.rel (0) target = $region17
    $region16: #{bert_forward.12} parent=1 // pred_region
      %29 = dma.done [#allocation4], 3072
    $region17: #{bert_forward.12} parent=1 // pred_fallthru
      _
    %p30 = scmp.eq.s32.totalorder 0, 0
    // Predicated region
    $region18: #{bert_forward.12} parent=1 // pred_check
      %p31 = pneg %p30
    $region19: #{bert_forward.12} parent=1 // pred_check_branch
      %33 = sbr.rel (%p31) target = $region21
    $region20: #{bert_forward.12} parent=1 // pred_region
      %34 = vst [vmem:[#allocation2] sm:$0xff] 0.0
      %35 = vst [vmem:[#allocation2 + $0x8] sm:$0xff] 0.0
      %36 = vst [vmem:[#allocation2 + $0x10] sm:$0xff] 0.0
      %37 = vst [vmem:[#allocation2 + $0x18] sm:$0xff] 0.0
      %38 = vst [vmem:[#allocation2 + $0x20] sm:$0xff] 0.0
      %39 = vst [vmem:[#allocation2 + $0x28] sm:$0xff] 0.0
    $region21: #{bert_forward.12} parent=1 // pred_fallthru
      _
    %v40 = vld [vmem:[#allocation2] sm:$0xff]
    %v41 = vld [vmem:[#allocation2 + $0x8] sm:$0xff]
    %v42 = vld [vmem:[#allocation2 + $0x10] sm:$0xff]
    %v43 = vld [vmem:[#allocation2 + $0x18] sm:$0xff]
    %v44 = vld [vmem:[#allocation2 + $0x20] sm:$0xff]
    %v45 = vld [vmem:[#allocation2 + $0x28] sm:$0xff]
    %v46 = vld [vmem:[%s0] sm:$0xf]
    %v47 = vld [vmem:[%s0 + $0x4] sm:$0xf]
    %v48 = vld [vmem:[#allocation3] sm:$0xff]
    %v49 = vld [vmem:[#allocation3 + $0x8] sm:$0xf]
    %v50 = vld [vmem:[#allocation3 + $0xc] sm:$0xff]
    %v51 = vld [vmem:[#allocation3 + $0x14] sm:$0xf]
    %v52 = vld [vmem:[#allocation3 + $0x18] sm:$0xff]
    %v53 = vld [vmem:[#allocation3 + $0x20] sm:$0xf]
    %v54 = vld [vmem:[#allocation3 + $0x24] sm:$0xff]
    %v55 = vld [vmem:[#allocation3 + $0x2c] sm:$0xf]
    %v56 = vld [vmem:[#allocation3 + $0x30] sm:$0xff]
    %v57 = vld [vmem:[#allocation3 + $0x38] sm:$0xf]
    %v58 = vld [vmem:[#allocation3 + $0x3c] sm:$0xff]
    %v59 = vld [vmem:[#allocation3 + $0x44] sm:$0xf]
    %v60 = vld [vmem:[#allocation3 + $0x48] sm:$0xff]
    %v61 = vld [vmem:[#allocation3 + $0x50] sm:$0xf]
    %v62 = vld [vmem:[#allocation3 + $0x54] sm:$0xff]
    %v63 = vld [vmem:[#allocation3 + $0x5c] sm:$0xf]
    %v64 = vld [vmem:[#allocation3 + $0x60] sm:$0xff]
    %v65 = vld [vmem:[#allocation3 + $0x68] sm:$0xf]
    %v66 = vld [vmem:[#allocation3 + $0x6c] sm:$0xff]
    %v67 = vld [vmem:[#allocation3 + $0x74] sm:$0xf]
    %v68 = vld [vmem:[#allocation3 + $0x78] sm:$0xff]
    %v69 = vld [vmem:[#allocation3 + $0x80] sm:$0xf]
    %v70 = vld [vmem:[#allocation3 + $0x84] sm:$0xff]
    %v71 = vld [vmem:[#allocation3 + $0x8c] sm:$0xf]
    %v72 = vld [vmem:[#allocation3 + $0x90] sm:$0xff]
    %v73 = vld [vmem:[#allocation3 + $0x98] sm:$0xf]
    %v74 = vld [vmem:[#allocation3 + $0x9c] sm:$0xff]
    %v75 = vld [vmem:[#allocation3 + $0xa4] sm:$0xf]
    %v76 = vld [vmem:[#allocation3 + $0xa8] sm:$0xff]
    %v77 = vld [vmem:[#allocation3 + $0xb0] sm:$0xf]
    %v78 = vld [vmem:[#allocation3 + $0xb4] sm:$0xff]
    %v79 = vld [vmem:[#allocation3 + $0xbc] sm:$0xf]
    %v82 = vunpack.c.l.b16 %v46
    %v83 = vunpack.c.l.b16 %v47
    %v84 = vpack.c.b16 %v83, %v82
    %v118 = vunpack.c.l.b16 %v48
    %v119 = vunpack.c.h.b16 %v48
    %v120 = vunpack.c.l.b16 %v49
    %v121 = vunpack.c.l.b16 %v50
    %v122 = vunpack.c.h.b16 %v50
    %v123 = vunpack.c.l.b16 %v51
    %v124 = vunpack.c.l.b16 %v52
    %v125 = vunpack.c.h.b16 %v52
    %v126 = vunpack.c.l.b16 %v53
    %v127 = vunpack.c.l.b16 %v54
    %v128 = vunpack.c.h.b16 %v54
    %v129 = vunpack.c.l.b16 %v55
    %v130 = vunpack.c.l.b16 %v56
    %v131 = vunpack.c.h.b16 %v56
    %v132 = vunpack.c.l.b16 %v57
    %v133 = vunpack.c.l.b16 %v58
    %v134 = vunpack.c.h.b16 %v58
    %v135 = vunpack.c.l.b16 %v59
    %v136 = vunpack.c.l.b16 %v60
    %v137 = vunpack.c.h.b16 %v60
    %v138 = vunpack.c.l.b16 %v61
    %v139 = vunpack.c.l.b16 %v62
    %v140 = vunpack.c.h.b16 %v62
    %v141 = vunpack.c.l.b16 %v63
    %v142 = vunpack.c.l.b16 %v64
    %v143 = vunpack.c.h.b16 %v64
    %v144 = vunpack.c.l.b16 %v65
    %v145 = vunpack.c.l.b16 %v66
    %v146 = vunpack.c.h.b16 %v66
    %v147 = vunpack.c.l.b16 %v67
    %v148 = vunpack.c.l.b16 %v68
    %v149 = vunpack.c.h.b16 %v68
    %v150 = vunpack.c.l.b16 %v69
    %v151 = vunpack.c.l.b16 %v70
    %v152 = vunpack.c.h.b16 %v70
    %v153 = vunpack.c.l.b16 %v71
    %v154 = vunpack.c.l.b16 %v72
    %v155 = vunpack.c.h.b16 %v72
    %v156 = vunpack.c.l.b16 %v73
    %v157 = vunpack.c.l.b16 %v74
    %v158 = vunpack.c.h.b16 %v74
    %v159 = vunpack.c.l.b16 %v75
    %v160 = vunpack.c.l.b16 %v76
    %v161 = vunpack.c.h.b16 %v76
    %v162 = vunpack.c.l.b16 %v77
    %v163 = vunpack.c.l.b16 %v78
    %v164 = vunpack.c.h.b16 %v78
    %v165 = vunpack.c.l.b16 %v79
    %v166 = vpack.c.b16 %v121, %v118
    %v167 = vpack.c.b16 %v122, %v119
    %v168 = vpack.c.b16 %v123, %v120
    %v169 = vpack.c.b16 %v127, %v124
    %v170 = vpack.c.b16 %v128, %v125
    %v171 = vpack.c.b16 %v129, %v126
    %v172 = vpack.c.b16 %v133, %v130
    %v173 = vpack.c.b16 %v134, %v131
    %v174 = vpack.c.b16 %v135, %v132
    %v175 = vpack.c.b16 %v139, %v136
    %v176 = vpack.c.b16 %v140, %v137
    %v177 = vpack.c.b16 %v141, %v138
    %v178 = vpack.c.b16 %v145, %v142
    %v179 = vpack.c.b16 %v146, %v143
    %v180 = vpack.c.b16 %v147, %v144
    %v181 = vpack.c.b16 %v151, %v148
    %v182 = vpack.c.b16 %v152, %v149
    %v183 = vpack.c.b16 %v153, %v150
    %v184 = vpack.c.b16 %v157, %v154
    %v185 = vpack.c.b16 %v158, %v155
    %v186 = vpack.c.b16 %v159, %v156
    %v187 = vpack.c.b16 %v163, %v160
    %v188 = vpack.c.b16 %v164, %v161
    %v189 = vpack.c.b16 %v165, %v162
    %214 = vmatpush.bf16.msra.mxu0 %v187
    %215 = vmatpush.bf16.msra.mxu0 %v184
    %216 = vmatpush.bf16.msra.mxu0 %v181
    %217 = vmatpush.bf16.msra.mxu0 %v178
    %218 = vmatpush.bf16.msra.mxu0 %v175
    %219 = vmatpush.bf16.msra.mxu0 %v172
    %220 = vmatpush.bf16.msra.mxu0 %v169
    %221 = vmatpush.bf16.msra.mxu0 %v166
    %222 = vmatmul.bf16.gmra.mxu0 %v84
    %v223 = vpop.f32.mrf.mxu0
    %v224 = vadd.f32 0.0, %v223
    %v225 = vpop.f32.mrf.mxu0
    %v226 = vadd.f32 0.0, %v225
    %227 = vdwg.mxu0
    %228 = vmatpush.bf16.msra.mxu0 %v188
    %229 = vmatpush.bf16.msra.mxu0 %v185
    %230 = vmatpush.bf16.msra.mxu0 %v182
    %231 = vmatpush.bf16.msra.mxu0 %v179
    %232 = vmatpush.bf16.msra.mxu0 %v176
    %233 = vmatpush.bf16.msra.mxu0 %v173
    %234 = vmatpush.bf16.msra.mxu0 %v170
    %235 = vmatpush.bf16.msra.mxu0 %v167
    %236 = vmatmul.bf16.gmra.mxu0 %v84
    %v237 = vpop.f32.mrf.mxu0
    %v238 = vadd.f32 0.0, %v237
    %v239 = vpop.f32.mrf.mxu0
    %v240 = vadd.f32 0.0, %v239
    %241 = vdwg.mxu0
    %242 = vmatpush.bf16.msra.mxu0 %v189
    %243 = vmatpush.bf16.msra.mxu0 %v186
    %244 = vmatpush.bf16.msra.mxu0 %v183
    %245 = vmatpush.bf16.msra.mxu0 %v180
    %246 = vmatpush.bf16.msra.mxu0 %v177
    %247 = vmatpush.bf16.msra.mxu0 %v174
    %248 = vmatpush.bf16.msra.mxu0 %v171
    %249 = vmatpush.bf16.msra.mxu0 %v168
    %250 = vmatmul.bf16.gmra.mxu0 %v84
    %v251 = vpop.f32.mrf.mxu0
    %v252 = vadd.f32 0.0, %v251
    %v253 = vpop.f32.mrf.mxu0
    %v254 = vadd.f32 0.0, %v253
    %255 = vdwg.mxu0
    %v256 = vadd.f32 %v40, %v224
    %v257 = vadd.f32 %v41, %v238
    %v258 = vadd.f32 %v42, %v252
    %v259 = vadd.f32 %v43, %v226
    %v260 = vadd.f32 %v44, %v240
    %v261 = vadd.f32 %v45, %v254
    %262 = vst [vmem:[#allocation2] sm:$0xff] %v256
    %263 = vst [vmem:[#allocation2 + $0x8] sm:$0xff] %v257
    %264 = vst [vmem:[#allocation2 + $0x10] sm:$0xff] %v258
    %265 = vst [vmem:[#allocation2 + $0x18] sm:$0xff] %v259
    %266 = vst [vmem:[#allocation2 + $0x20] sm:$0xff] %v260
    %267 = vst [vmem:[#allocation2 + $0x28] sm:$0xff] %v261
    // Predicated region
    $region22: #{bert_forward.12} parent=1 // pred_check
      %p268 = pneg %p30
    $region23: #{bert_forward.12} parent=1 // pred_check_branch
      %270 = sbr.rel (%p268) target = $region25
    $region24: #{bert_forward.12} parent=1 // pred_region
      %v271 = vld [vmem:[#allocation2] sm:$0xff]
      %v272 = vld [vmem:[#allocation2 + $0x8] sm:$0xff]
      %v273 = vld [vmem:[#allocation2 + $0x10] sm:$0xff]
      %v274 = vld [vmem:[#allocation2 + $0x18] sm:$0xff]
      %v275 = vld [vmem:[#allocation2 + $0x20] sm:$0xff]
      %v276 = vld [vmem:[#allocation2 + $0x28] sm:$0xff]
      %v277 = vld [vmem:[%s2] sm:$0x7]
      %v279 = vperm.slane %v277, 0
      %v280 = vperm.slane %v277, 1
      %v281 = vperm.slane %v277, 2
      %v285 = vadd.f32 %v271, %v279
      %v286 = vadd.f32 %v272, %v280
      %v287 = vadd.f32 %v273, %v281
      %v288 = vadd.f32 %v274, %v279
      %v289 = vadd.f32 %v275, %v280
      %v290 = vadd.f32 %v276, %v281
      %v291 = vpack.c.bf16 %v286, %v285
      %v292 = vpack.c.bf16 %v287, %v287
      %v293 = vpack.c.bf16 %v289, %v288
      %v294 = vpack.c.bf16 %v290, %v290
      %295 = vst [vmem:[%s3] sm:$0xff] %v291
      %296 = vst [vmem:[%s3 + $0x8] sm:$0xf] %v292
      %297 = vst [vmem:[%s3 + $0xc] sm:$0xff] %v293
      %298 = vst [vmem:[%s3 + $0x14] sm:$0xf] %v294
    $region25: #{bert_forward.12} parent=1 // pred_fallthru
      _
    // Predicated region
    $region26: #{bert_forward.12} parent=1 // pred_check
      _
    $region27: #{bert_forward.12} parent=1 // pred_check_branch
      %300 = sbr.rel (0) target = $region29
    $region28: #{bert_forward.12} parent=1 // pred_region
      _
    $region29: #{bert_forward.12} parent=1 // pred_fallthru
      _
    // Predicated region
    $region30: #{bert_forward.12} parent=1 // pred_check
      _
    $region31: #{bert_forward.12} parent=1 // pred_check_branch
      %302 = sbr.rel (0) target = $region33
    $region32: #{bert_forward.12} parent=1 // pred_region
      _
    $region33: #{bert_forward.12} parent=1 // pred_fallthru
      _
    %303 = vsyncpa [#allocation4], 1

// kernel: bert_forward.16
$region0: #{bert_forward.16}
  #allocation0 [shape = 'u32[]', space=smem, size = 0x4, offset = 0x4, fixed_abs, tag = 'smem constant byte address 0x4 - core index']
  #allocation1 [shape = 'u32[72,128]{1,0:T(1,128)}', space=vmem, size = 0x9000, scoped, tag = 'internal scratch']
  #allocation2 [shape = 'f32[16,128]{1,0:T(8,128)}', space=vmem, size = 0x2000, scoped, tag = 'scratch operand']
  %s0 = inlined_call_operand.vmem [shape: bf16[16,256], index: 0, kind: input, shape index: {}]
  %s1 = inlined_call_operand.hbm [shape: bf16[256,128], index: 1, kind: input, shape index: {}]
  %s2 = inlined_call_operand.vmem [shape: f32[1,128], index: 2, kind: input, shape index: {}]
  %s3 = inlined_call_operand.vmem [shape: bf16[16,128], index: 3, kind: input, shape index: {}]
  %s4 = inlined_call_operand.vmem [shape: f32[1,128], index: 4, kind: input, shape index: {}]
  %s5 = inlined_call_operand.vmem [shape: f32[1,128], index: 5, kind: input, shape index: {}]
  %s6 = inlined_call_operand.vmem [shape: bf16[16,128], index: 6, kind: output, shape index: {}]
  %s7 = sld [smem:[#allocation0]]
  $region46: #{bert_forward.16} parent=0
    _
  %s9 = ssub.s32 1, %s7
  %s10 = scalar_select 0, %s9, %s7
  $region1: #{bert_forward.16} parent=0
    #allocation3 [shape = 'u8[65536]{0}', space=vmem, size = 0x10000, scoped, tag = 'input window, operand 1, single buffered']
    #allocation4 [shape = 's32[1]{0}', space=sflag, size = 0x4, scoped, tag = 'scoped memory for bert_forward.16']
    %11 = vsyncpa [#allocation4], 0
    // Predicated region
    $region2: #{bert_forward.16} parent=1 // pred_check
      _
    $region3: #{bert_forward.16} parent=1 // pred_check_branch
      %13 = sbr.rel (0) target = $region5
    $region4: #{bert_forward.16} parent=1 // pred_region
      _
    $region5: #{bert_forward.16} parent=1 // pred_fallthru
      _
    // Predicated region
    $region6: #{bert_forward.16} parent=1 // pred_check
      _
    $region7: #{bert_forward.16} parent=1 // pred_check_branch
      %15 = sbr.rel (0) target = $region9
    $region8: #{bert_forward.16} parent=1 // pred_region
      %17 = vsyncadd [#allocation4], 0
      %s18 = sshll.u32 %s1, 4
      %s19 = int_to_ptr.hbm [resolvable:$true] %s18
      %s20 = sshll.u32 [#allocation3], 4
      %s21 = int_to_ptr.vmem [resolvable:$true] %s20
      %26 = dma.hbm_to_vmem [thread:$0]  %s19, 2048, %s21, [#allocation4], 64, 64, 4
    $region9: #{bert_forward.16} parent=1 // pred_fallthru
      _
    // Predicated region
    $region10: #{bert_forward.16} parent=1 // pred_check
      _
    $region11: #{bert_forward.16} parent=1 // pred_check_branch
      %28 = sbr.rel (0) target = $region13
    $region12: #{bert_forward.16} parent=1 // pred_region
      _
    $region13: #{bert_forward.16} parent=1 // pred_fallthru
      _
    // Predicated region
    $region14: #{bert_forward.16} parent=1 // pred_check
      _
    $region15: #{bert_forward.16} parent=1 // pred_check_branch
      %30 = sbr.rel (0) target = $region17
    $region16: #{bert_forward.16} parent=1 // pred_region
      _
    $region17: #{bert_forward.16} parent=1 // pred_fallthru
      _
    // Predicated region
    $region18: #{bert_forward.16} parent=1 // pred_check
      _
    $region19: #{bert_forward.16} parent=1 // pred_check_branch
      %32 = sbr.rel (0) target = $region21
    $region20: #{bert_forward.16} parent=1 // pred_region
      _
    $region21: #{bert_forward.16} parent=1 // pred_fallthru
      _
    // Predicated region
    $region22: #{bert_forward.16} parent=1 // pred_check
      _
    $region23: #{bert_forward.16} parent=1 // pred_check_branch
      %34 = sbr.rel (0) target = $region25
    $region24: #{bert_forward.16} parent=1 // pred_region
      _
    $region25: #{bert_forward.16} parent=1 // pred_fallthru
      _
    // Predicated region
    $region26: #{bert_forward.16} parent=1 // pred_check
      _
    $region27: #{bert_forward.16} parent=1 // pred_check_branch
      %36 = sbr.rel (0) target = $region29
    $region28: #{bert_forward.16} parent=1 // pred_region
      %38 = dma.done [#allocation4], 2048
    $region29: #{bert_forward.16} parent=1 // pred_fallthru
      _
    %p39 = scmp.eq.s32.totalorder 0, 0
    // Predicated region
    $region30: #{bert_forward.16} parent=1 // pred_check
      %p40 = pneg %p39
    $region31: #{bert_forward.16} parent=1 // pred_check_branch
      %42 = sbr.rel (%p40) target = $region33
    $region32: #{bert_forward.16} parent=1 // pred_region
      %43 = vst [vmem:[#allocation2] sm:$0xff] 0.0
      %44 = vst [vmem:[#allocation2 + $0x8] sm:$0xff] 0.0
    $region33: #{bert_forward.16} parent=1 // pred_fallthru
      _
    %v45 = vld [vmem:[#allocation2] sm:$0xff]
    %v46 = vld [vmem:[#allocation2 + $0x8] sm:$0xff]
    %v47 = vld [vmem:[%s0] sm:$0xff]
    %v48 = vld [vmem:[%s0 + $0x8] sm:$0xff]
    %v49 = vld [vmem:[#allocation3] sm:$0xf]
    %v50 = vld [vmem:[#allocation3 + $0x4] sm:$0xf]
    %v51 = vld [vmem:[#allocation3 + $0x8] sm:$0xf]
    %v52 = vld [vmem:[#allocation3 + $0xc] sm:$0xf]
    %v53 = vld [vmem:[#allocation3 + $0x10] sm:$0xf]
    %v54 = vld [vmem:[#allocation3 + $0x14] sm:$0xf]
    %v55 = vld [vmem:[#allocation3 + $0x18] sm:$0xf]
    %v56 = vld [vmem:[#allocation3 + $0x1c] sm:$0xf]
    %v57 = vld [vmem:[#allocation3 + $0x20] sm:$0xf]
    %v58 = vld [vmem:[#allocation3 + $0x24] sm:$0xf]
    %v59 = vld [vmem:[#allocation3 + $0x28] sm:$0xf]
    %v60 = vld [vmem:[#allocation3 + $0x2c] sm:$0xf]
    %v61 = vld [vmem:[#allocation3 + $0x30] sm:$0xf]
    %v62 = vld [vmem:[#allocation3 + $0x34] sm:$0xf]
    %v63 = vld [vmem:[#allocation3 + $0x38] sm:$0xf]
    %v64 = vld [vmem:[#allocation3 + $0x3c] sm:$0xf]
    %v65 = vld [vmem:[#allocation3 + $0x40] sm:$0xf]
    %v66 = vld [vmem:[#allocation3 + $0x44] sm:$0xf]
    %v67 = vld [vmem:[#allocation3 + $0x48] sm:$0xf]
    %v68 = vld [vmem:[#allocation3 + $0x4c] sm:$0xf]
    %v69 = vld [vmem:[#allocation3 + $0x50] sm:$0xf]
    %v70 = vld [vmem:[#allocation3 + $0x54] sm:$0xf]
    %v71 = vld [vmem:[#allocation3 + $0x58] sm:$0xf]
    %v72 = vld [vmem:[#allocation3 + $0x5c] sm:$0xf]
    %v73 = vld [vmem:[#allocation3 + $0x60] sm:$0xf]
    %v74 = vld [vmem:[#allocation3 + $0x64] sm:$0xf]
    %v75 = vld [vmem:[#allocation3 + $0x68] sm:$0xf]
    %v76 = vld [vmem:[#allocation3 + $0x6c] sm:$0xf]
    %v77 = vld [vmem:[#allocation3 + $0x70] sm:$0xf]
    %v78 = vld [vmem:[#allocation3 + $0x74] sm:$0xf]
    %v79 = vld [vmem:[#allocation3 + $0x78] sm:$0xf]
    %v80 = vld [vmem:[#allocation3 + $0x7c] sm:$0xf]
    %v83 = vunpack.c.l.b16 %v47
    %v84 = vunpack.c.h.b16 %v47
    %v85 = vunpack.c.l.b16 %v48
    %v86 = vunpack.c.h.b16 %v48
    %v87 = vpack.c.b16 %v85, %v83
    %v88 = vpack.c.b16 %v86, %v84
    %v123 = vunpack.c.l.b16 %v49
    %v124 = vunpack.c.l.b16 %v50
    %v125 = vunpack.c.l.b16 %v51
    %v126 = vunpack.c.l.b16 %v52
    %v127 = vunpack.c.l.b16 %v53
    %v128 = vunpack.c.l.b16 %v54
    %v129 = vunpack.c.l.b16 %v55
    %v130 = vunpack.c.l.b16 %v56
    %v131 = vunpack.c.l.b16 %v57
    %v132 = vunpack.c.l.b16 %v58
    %v133 = vunpack.c.l.b16 %v59
    %v134 = vunpack.c.l.b16 %v60
    %v135 = vunpack.c.l.b16 %v61
    %v136 = vunpack.c.l.b16 %v62
    %v137 = vunpack.c.l.b16 %v63
    %v138 = vunpack.c.l.b16 %v64
    %v139 = vunpack.c.l.b16 %v65
    %v140 = vunpack.c.l.b16 %v66
    %v141 = vunpack.c.l.b16 %v67
    %v142 = vunpack.c.l.b16 %v68
    %v143 = vunpack.c.l.b16 %v69
    %v144 = vunpack.c.l.b16 %v70
    %v145 = vunpack.c.l.b16 %v71
    %v146 = vunpack.c.l.b16 %v72
    %v147 = vunpack.c.l.b16 %v73
    %v148 = vunpack.c.l.b16 %v74
    %v149 = vunpack.c.l.b16 %v75
    %v150 = vunpack.c.l.b16 %v76
    %v151 = vunpack.c.l.b16 %v77
    %v152 = vunpack.c.l.b16 %v78
    %v153 = vunpack.c.l.b16 %v79
    %v154 = vunpack.c.l.b16 %v80
    %v155 = vpack.c.b16 %v124, %v123
    %v156 = vpack.c.b16 %v126, %v125
    %v157 = vpack.c.b16 %v128, %v127
    %v158 = vpack.c.b16 %v130, %v129
    %v159 = vpack.c.b16 %v132, %v131
    %v160 = vpack.c.b16 %v134, %v133
    %v161 = vpack.c.b16 %v136, %v135
    %v162 = vpack.c.b16 %v138, %v137
    %v163 = vpack.c.b16 %v140, %v139
    %v164 = vpack.c.b16 %v142, %v141
    %v165 = vpack.c.b16 %v144, %v143
    %v166 = vpack.c.b16 %v146, %v145
    %v167 = vpack.c.b16 %v148, %v147
    %v168 = vpack.c.b16 %v150, %v149
    %v169 = vpack.c.b16 %v152, %v151
    %v170 = vpack.c.b16 %v154, %v153
    %187 = vmatpush.bf16.msra.mxu0 %v162
    %188 = vmatpush.bf16.msra.mxu0 %v161
    %189 = vmatpush.bf16.msra.mxu0 %v160
    %190 = vmatpush.bf16.msra.mxu0 %v159
    %191 = vmatpush.bf16.msra.mxu0 %v158
    %192 = vmatpush.bf16.msra.mxu0 %v157
    %193 = vmatpush.bf16.msra.mxu0 %v156
    %194 = vmatpush.bf16.msra.mxu0 %v155
    %195 = vmatmul.bf16.gmra.mxu0 %v87
    %v196 = vpop.f32.mrf.mxu0
    %v197 = vadd.f32 0.0, %v196
    %v198 = vpop.f32.mrf.mxu0
    %v199 = vadd.f32 0.0, %v198
    %200 = vdwg.mxu0
    %201 = vmatpush.bf16.msra.mxu0 %v170
    %202 = vmatpush.bf16.msra.mxu0 %v169
    %203 = vmatpush.bf16.msra.mxu0 %v168
    %204 = vmatpush.bf16.msra.mxu0 %v167
    %205 = vmatpush.bf16.msra.mxu0 %v166
    %206 = vmatpush.bf16.msra.mxu0 %v165
    %207 = vmatpush.bf16.msra.mxu0 %v164
    %208 = vmatpush.bf16.msra.mxu0 %v163
    %209 = vmatmul.bf16.gmra.mxu0 %v88
    %v210 = vpop.f32.mrf.mxu0
    %v211 = vadd.f32 %v197, %v210
    %v212 = vpop.f32.mrf.mxu0
    %v213 = vadd.f32 %v199, %v212
    %214 = vdwg.mxu0
    %v215 = vadd.f32 %v45, %v211
    %v216 = vadd.f32 %v46, %v213
    %217 = vst [vmem:[#allocation2] sm:$0xff] %v215
    %218 = vst [vmem:[#allocation2 + $0x8] sm:$0xff] %v216
    // Predicated region
    $region34: #{bert_forward.16} parent=1 // pred_check
      %p219 = pneg %p39
    $region35: #{bert_forward.16} parent=1 // pred_check_branch
      %221 = sbr.rel (%p219) target = $region37
    $region36: #{bert_forward.16} parent=1 // pred_region
      %v222 = vld [vmem:[#allocation2] sm:$0xff]
      %v223 = vld [vmem:[#allocation2 + $0x8] sm:$0xff]
      %v224 = vld [vmem:[%s2] sm:$0x1]
      %v226 = vperm.slane %v224, 0
      %v228 = vadd.f32 %v222, %v226
      %v229 = vadd.f32 %v223, %v226
      %v230 = vld [vmem:[%s3] sm:$0xf]
      %v231 = vld [vmem:[%s3 + $0x4] sm:$0xf]
      %v232 = vunpack.c.l.bf16 %v230
      %v233 = vunpack.c.l.bf16 %v231
      %v234 = vadd.f32 %v228, %v232
      %v235 = vadd.f32 %v229, %v233
      %236 = vadd.xlane.f32.xlu0 %v234
      %v237 = vpop.xlane.xlu0 %236
      %238 = vadd.xlane.f32.xlu0 %v235
      %v239 = vpop.xlane.xlu0 %238
      %v240 = vrcp.pop 128.0
      %v241 = vmul.f32 128.0, %v240
      %v242 = vsub.f32 1.0, %v241
      %v243 = vmul.f32 %v240, %v242
      %v244 = vadd.f32 %v240, %v243
      %vm245 = vweird.f32 %v240
      %v246 = vsel %vm245, %v240, %v244
      %v247 = vmul.f32 %v237, %v246
      %v248 = vmul.f32 %v239, %v246
      %v249 = vsub.f32 %v234, %v247
      %v250 = vsub.f32 %v235, %v248
      %v251 = vmul.f32 %v249, %v249
      %v252 = vmul.f32 %v250, %v250
      %253 = vadd.xlane.f32.xlu0 %v251
      %v254 = vpop.xlane.xlu0 %253
      %255 = vadd.xlane.f32.xlu0 %v252
      %v256 = vpop.xlane.xlu0 %255
      %v257 = vmul.f32 %v254, %v246
      %v258 = vmul.f32 %v256, %v246
      %v259 = vadd.f32 %v257, 1e-05
      %v260 = vadd.f32 %v258, 1e-05
      %v261 = vrsqrt.pop %v259
      %v262 = vmul.f32 %v261, %v259
      %v263 = vmul.f32 %v262, %v261
      %v264 = vmul.f32 0.5, %v263
      %v265 = vsub.f32 1.5, %v264
      %v266 = vmul.f32 %v261, %v265
      %vm267 = vweird.f32 %v259
      %vm268 = vweird.f32 %v261
      %vm269 = vmor %vm267, %vm268
      %v270 = vsel %vm269, %v261, %v266
      %v271 = vrsqrt.pop %v260
      %v272 = vmul.f32 %v271, %v260
      %v273 = vmul.f32 %v272, %v271
      %v274 = vmul.f32 0.5, %v273
      %v275 = vsub.f32 1.5, %v274
      %v276 = vmul.f32 %v271, %v275
      %vm277 = vweird.f32 %v260
      %vm278 = vweird.f32 %v271
      %vm279 = vmor %vm277, %vm278
      %v280 = vsel %vm279, %v271, %v276
      %v281 = vmul.f32 %v249, %v270
      %v282 = vmul.f32 %v250, %v280
      %v283 = vld [vmem:[%s4] sm:$0x1]
      %v285 = vperm.slane %v283, 0
      %v287 = vmul.f32 %v281, %v285
      %v288 = vmul.f32 %v282, %v285
      %v289 = vld [vmem:[%s5] sm:$0x1]
      %v291 = vperm.slane %v289, 0
      %v293 = vadd.f32 %v287, %v291
      %v294 = vadd.f32 %v288, %v291
      %v295 = vpack.c.bf16 %v293, %v293
      %v296 = vpack.c.bf16 %v294, %v294
      %297 = vst [vmem:[%s6] sm:$0xf] %v295
      %298 = vst [vmem:[%s6 + $0x4] sm:$0xf] %v296
    $region37: #{bert_forward.16} parent=1 // pred_fallthru
      _
    // Predicated region
    $region38: #{bert_forward.16} parent=1 // pred_check
      _
    $region39: #{bert_forward.16} parent=1 // pred_check_branch
      %300 = sbr.rel (0) target = $region41
    $region40: #{bert_forward.16} parent=1 // pred_region
      _
    $region41: #{bert_forward.16} parent=1 // pred_fallthru
      _
    // Predicated region
    $region42: #{bert_forward.16} parent=1 // pred_check
      _
    $region43: #{bert_forward.16} parent=1 // pred_check_branch
      %302 = sbr.rel (0) target = $region45
    $region44: #{bert_forward.16} parent=1 // pred_region
      _
    $region45: #{bert_forward.16} parent=1 // pred_fallthru
      _
    %303 = vsyncpa [#allocation4], 1

// kernel: bert_forward.15
$region0: #{bert_forward.15}
  #allocation0 [shape = 'u32[]', space=smem, size = 0x4, offset = 0x4, fixed_abs, tag = 'smem constant byte address 0x4 - core index']
  #allocation1 [shape = 'u32[72,128]{1,0:T(1,128)}', space=vmem, size = 0x9000, scoped, tag = 'internal scratch']
  #allocation2 [shape = 'f32[16,256]{1,0:T(8,128)}', space=vmem, size = 0x4000, scoped, tag = 'scratch operand']
  %s0 = inlined_call_operand.vmem [shape: bf16[16,128], index: 0, kind: input, shape index: {}]
  %s1 = inlined_call_operand.hbm [shape: bf16[128,256], index: 1, kind: input, shape index: {}]
  %s2 = inlined_call_operand.vmem [shape: f32[1,256], index: 2, kind: input, shape index: {}]
  %s3 = inlined_call_operand.vmem [shape: bf16[16,256], index: 3, kind: output, shape index: {}]
  %s4 = sld [smem:[#allocation0]]
  $region34: #{bert_forward.15} parent=0
    _
  %s6 = ssub.s32 1, %s4
  %s7 = scalar_select 0, %s6, %s4
  $region1: #{bert_forward.15} parent=0
    #allocation3 [shape = 'u8[65536]{0}', space=vmem, size = 0x10000, scoped, tag = 'input window, operand 1, single buffered']
    #allocation4 [shape = 's32[1]{0}', space=sflag, size = 0x4, scoped, tag = 'scoped memory for bert_forward.15']
    %8 = vsyncpa [#allocation4], 0
    // Predicated region
    $region2: #{bert_forward.15} parent=1 // pred_check
      _
    $region3: #{bert_forward.15} parent=1 // pred_check_branch
      %10 = sbr.rel (0) target = $region5
    $region4: #{bert_forward.15} parent=1 // pred_region
      _
    $region5: #{bert_forward.15} parent=1 // pred_fallthru
      _
    // Predicated region
    $region6: #{bert_forward.15} parent=1 // pred_check
      _
    $region7: #{bert_forward.15} parent=1 // pred_check_branch
      %12 = sbr.rel (0) target = $region9
    $region8: #{bert_forward.15} parent=1 // pred_region
      %14 = vsyncadd [#allocation4], 0
      %s15 = sshll.u32 %s1, 4
      %s16 = int_to_ptr.hbm [resolvable:$true] %s15
      %s17 = sshll.u32 [#allocation3], 4
      %s18 = int_to_ptr.vmem [resolvable:$true] %s17
      %23 = dma.hbm_to_vmem [thread:$0]  %s16, 2048, %s18, [#allocation4], 128, 128, 8
    $region9: #{bert_forward.15} parent=1 // pred_fallthru
      _
    // Predicated region
    $region10: #{bert_forward.15} parent=1 // pred_check
      _
    $region11: #{bert_forward.15} parent=1 // pred_check_branch
      %25 = sbr.rel (0) target = $region13
    $region12: #{bert_forward.15} parent=1 // pred_region
      _
    $region13: #{bert_forward.15} parent=1 // pred_fallthru
      _
    // Predicated region
    $region14: #{bert_forward.15} parent=1 // pred_check
      _
    $region15: #{bert_forward.15} parent=1 // pred_check_branch
      %27 = sbr.rel (0) target = $region17
    $region16: #{bert_forward.15} parent=1 // pred_region
      %29 = dma.done [#allocation4], 2048
    $region17: #{bert_forward.15} parent=1 // pred_fallthru
      _
    %p30 = scmp.eq.s32.totalorder 0, 0
    // Predicated region
    $region18: #{bert_forward.15} parent=1 // pred_check
      %p31 = pneg %p30
    $region19: #{bert_forward.15} parent=1 // pred_check_branch
      %33 = sbr.rel (%p31) target = $region21
    $region20: #{bert_forward.15} parent=1 // pred_region
      %34 = vst [vmem:[#allocation2] sm:$0xff] 0.0
      %35 = vst [vmem:[#allocation2 + $0x8] sm:$0xff] 0.0
      %36 = vst [vmem:[#allocation2 + $0x10] sm:$0xff] 0.0
      %37 = vst [vmem:[#allocation2 + $0x18] sm:$0xff] 0.0
    $region21: #{bert_forward.15} parent=1 // pred_fallthru
      _
    %v38 = vld [vmem:[#allocation2] sm:$0xff]
    %v39 = vld [vmem:[#allocation2 + $0x8] sm:$0xff]
    %v40 = vld [vmem:[#allocation2 + $0x10] sm:$0xff]
    %v41 = vld [vmem:[#allocation2 + $0x18] sm:$0xff]
    %v42 = vld [vmem:[%s0] sm:$0xf]
    %v43 = vld [vmem:[%s0 + $0x4] sm:$0xf]
    %v44 = vld [vmem:[#allocation3] sm:$0xff]
    %v45 = vld [vmem:[#allocation3 + $0x8] sm:$0xff]
    %v46 = vld [vmem:[#allocation3 + $0x10] sm:$0xff]
    %v47 = vld [vmem:[#allocation3 + $0x18] sm:$0xff]
    %v48 = vld [vmem:[#allocation3 + $0x20] sm:$0xff]
    %v49 = vld [vmem:[#allocation3 + $0x28] sm:$0xff]
    %v50 = vld [vmem:[#allocation3 + $0x30] sm:$0xff]
    %v51 = vld [vmem:[#allocation3 + $0x38] sm:$0xff]
    %v52 = vld [vmem:[#allocation3 + $0x40] sm:$0xff]
    %v53 = vld [vmem:[#allocation3 + $0x48] sm:$0xff]
    %v54 = vld [vmem:[#allocation3 + $0x50] sm:$0xff]
    %v55 = vld [vmem:[#allocation3 + $0x58] sm:$0xff]
    %v56 = vld [vmem:[#allocation3 + $0x60] sm:$0xff]
    %v57 = vld [vmem:[#allocation3 + $0x68] sm:$0xff]
    %v58 = vld [vmem:[#allocation3 + $0x70] sm:$0xff]
    %v59 = vld [vmem:[#allocation3 + $0x78] sm:$0xff]
    %v62 = vunpack.c.l.b16 %v42
    %v63 = vunpack.c.l.b16 %v43
    %v64 = vpack.c.b16 %v63, %v62
    %v82 = vunpack.c.l.b16 %v44
    %v83 = vunpack.c.h.b16 %v44
    %v84 = vunpack.c.l.b16 %v45
    %v85 = vunpack.c.h.b16 %v45
    %v86 = vunpack.c.l.b16 %v46
    %v87 = vunpack.c.h.b16 %v46
    %v88 = vunpack.c.l.b16 %v47
    %v89 = vunpack.c.h.b16 %v47
    %v90 = vunpack.c.l.b16 %v48
    %v91 = vunpack.c.h.b16 %v48
    %v92 = vunpack.c.l.b16 %v49
    %v93 = vunpack.c.h.b16 %v49
    %v94 = vunpack.c.l.b16 %v50
    %v95 = vunpack.c.h.b16 %v50
    %v96 = vunpack.c.l.b16 %v51
    %v97 = vunpack.c.h.b16 %v51
    %v98 = vunpack.c.l.b16 %v52
    %v99 = vunpack.c.h.b16 %v52
    %v100 = vunpack.c.l.b16 %v53
    %v101 = vunpack.c.h.b16 %v53
    %v102 = vunpack.c.l.b16 %v54
    %v103 = vunpack.c.h.b16 %v54
    %v104 = vunpack.c.l.b16 %v55
    %v105 = vunpack.c.h.b16 %v55
    %v106 = vunpack.c.l.b16 %v56
    %v107 = vunpack.c.h.b16 %v56
    %v108 = vunpack.c.l.b16 %v57
    %v109 = vunpack.c.h.b16 %v57
    %v110 = vunpack.c.l.b16 %v58
    %v111 = vunpack.c.h.b16 %v58
    %v112 = vunpack.c.l.b16 %v59
    %v113 = vunpack.c.h.b16 %v59
    %v114 = vpack.c.b16 %v84, %v82
    %v115 = vpack.c.b16 %v85, %v83
    %v116 = vpack.c.b16 %v88, %v86
    %v117 = vpack.c.b16 %v89, %v87
    %v118 = vpack.c.b16 %v92, %v90
    %v119 = vpack.c.b16 %v93, %v91
    %v120 = vpack.c.b16 %v96, %v94
    %v121 = vpack.c.b16 %v97, %v95
    %v122 = vpack.c.b16 %v100, %v98
    %v123 = vpack.c.b16 %v101, %v99
    %v124 = vpack.c.b16 %v104, %v102
    %v125 = vpack.c.b16 %v105, %v103
    %v126 = vpack.c.b16 %v108, %v106
    %v127 = vpack.c.b16 %v109, %v107
    %v128 = vpack.c.b16 %v112, %v110
    %v129 = vpack.c.b16 %v113, %v111
    %146 = vmatpush.bf16.msra.mxu0 %v128
    %147 = vmatpush.bf16.msra.mxu0 %v126
    %148 = vmatpush.bf16.msra.mxu0 %v124
    %149 = vmatpush.bf16.msra.mxu0 %v122
    %150 = vmatpush.bf16.msra.mxu0 %v120
    %151 = vmatpush.bf16.msra.mxu0 %v118
    %152 = vmatpush.bf16.msra.mxu0 %v116
    %153 = vmatpush.bf16.msra.mxu0 %v114
    %154 = vmatmul.bf16.gmra.mxu0 %v64
    %v155 = vpop.f32.mrf.mxu0
    %v156 = vadd.f32 0.0, %v155
    %v157 = vpop.f32.mrf.mxu0
    %v158 = vadd.f32 0.0, %v157
    %159 = vdwg.mxu0
    %160 = vmatpush.bf16.msra.mxu0 %v129
    %161 = vmatpush.bf16.msra.mxu0 %v127
    %162 = vmatpush.bf16.msra.mxu0 %v125
    %163 = vmatpush.bf16.msra.mxu0 %v123
    %164 = vmatpush.bf16.msra.mxu0 %v121
    %165 = vmatpush.bf16.msra.mxu0 %v119
    %166 = vmatpush.bf16.msra.mxu0 %v117
    %167 = vmatpush.bf16.msra.mxu0 %v115
    %168 = vmatmul.bf16.gmra.mxu0 %v64
    %v169 = vpop.f32.mrf.mxu0
    %v170 = vadd.f32 0.0, %v169
    %v171 = vpop.f32.mrf.mxu0
    %v172 = vadd.f32 0.0, %v171
    %173 = vdwg.mxu0
    %v174 = vadd.f32 %v38, %v156
    %v175 = vadd.f32 %v39, %v170
    %v176 = vadd.f32 %v40, %v158
    %v177 = vadd.f32 %v41, %v172
    %178 = vst [vmem:[#allocation2] sm:$0xff] %v174
    %179 = vst [vmem:[#allocation2 + $0x8] sm:$0xff] %v175
    %180 = vst [vmem:[#allocation2 + $0x10] sm:$0xff] %v176
    %181 = vst [vmem:[#allocation2 + $0x18] sm:$0xff] %v177
    // Predicated region
    $region22: #{bert_forward.15} parent=1 // pred_check
      %p182 = pneg %p30
    $region23: #{bert_forward.15} parent=1 // pred_check_branch
      %184 = sbr.rel (%p182) target = $region25
    $region24: #{bert_forward.15} parent=1 // pred_region
      %v185 = vld [vmem:[#allocation2] sm:$0xff]
      %v186 = vld [vmem:[#allocation2 + $0x8] sm:$0xff]
      %v187 = vld [vmem:[#allocation2 + $0x10] sm:$0xff]
      %v188 = vld [vmem:[#allocation2 + $0x18] sm:$0xff]
      %v189 = vld [vmem:[%s2] sm:$0x3]
      %v191 = vperm.slane %v189, 0
      %v192 = vperm.slane %v189, 1
      %v195 = vadd.f32 %v185, %v191
      %v196 = vadd.f32 %v186, %v192
      %v197 = vadd.f32 %v187, %v191
      %v198 = vadd.f32 %v188, %v192
      %v199 = vmul.f32 %v195, 0.5
      %v200 = vmul.f32 %v196, 0.5
      %v201 = vmul.f32 %v197, 0.5
      %v202 = vmul.f32 %v198, 0.5
      %v203 = vmul.f32 %v195, 0.044715
      %v204 = vmul.f32 %v196, 0.044715
      %v205 = vmul.f32 %v197, 0.044715
      %v206 = vmul.f32 %v198, 0.044715
      %v207 = vmul.f32 %v203, %v195
      %v208 = vmul.f32 %v204, %v196
      %v209 = vmul.f32 %v205, %v197
      %v210 = vmul.f32 %v206, %v198
      %v211 = vmul.f32 %v207, %v195
      %v212 = vmul.f32 %v208, %v196
      %v213 = vmul.f32 %v209, %v197
      %v214 = vmul.f32 %v210, %v198
      %v215 = vadd.f32 %v195, %v211
      %v216 = vadd.f32 %v196, %v212
      %v217 = vadd.f32 %v197, %v213
      %v218 = vadd.f32 %v198, %v214
      %v219 = vmul.f32 %v215, 0.7978846
      %v220 = vmul.f32 %v216, 0.7978846
      %v221 = vmul.f32 %v217, 0.7978846
      %v222 = vmul.f32 %v218, 0.7978846
      %v223 = vtanh.pop %v219
      %v224 = vtanh.pop %v220
      %v225 = vtanh.pop %v221
      %v226 = vtanh.pop %v222
      %v227 = vadd.f32 %v223, 1.0
      %v228 = vadd.f32 %v224, 1.0
      %v229 = vadd.f32 %v225, 1.0
      %v230 = vadd.f32 %v226, 1.0
      %v231 = vmul.f32 %v199, %v227
      %v232 = vmul.f32 %v200, %v228
      %v233 = vmul.f32 %v201, %v229
      %v234 = vmul.f32 %v202, %v230
      %v235 = vpack.c.bf16 %v232, %v231
      %v236 = vpack.c.bf16 %v234, %v233
      %237 = vst [vmem:[%s3] sm:$0xff] %v235
      %238 = vst [vmem:[%s3 + $0x8] sm:$0xff] %v236
    $region25: #{bert_forward.15} parent=1 // pred_fallthru
      _
    // Predicated region
    $region26: #{bert_forward.15} parent=1 // pred_check
      _
    $region27: #{bert_forward.15} parent=1 // pred_check_branch
      %240 = sbr.rel (0) target = $region29
    $region28: #{bert_forward.15} parent=1 // pred_region
      _
    $region29: #{bert_forward.15} parent=1 // pred_fallthru
      _
    // Predicated region
    $region30: #{bert_forward.15} parent=1 // pred_check
      _
    $region31: #{bert_forward.15} parent=1 // pred_check_branch
      %242 = sbr.rel (0) target = $region33
    $region32: #{bert_forward.15} parent=1 // pred_region
      _
    $region33: #{bert_forward.15} parent=1 // pred_fallthru
      _
    %243 = vsyncpa [#allocation4], 1

</llo_original>
